<compile_context>
chip_gen: v7x
topology: tpu7x:2x2x1
jax: 0.10.0
libtpu: 0.0.40
codegen_flags: <defaults>
</compile_context>

<pallas_src>
import jax
import jax.numpy as jnp
from jax import lax
from jax.experimental import pallas as pl
from jax.experimental.pallas import tpu as pltpu


def _shift_lanes(v, shift, length):
    """Circular shift along the last (lane) axis: out[..., l] = v[..., (l - shift) % length]."""
    shift = shift % length
    if shift == 0:
        return v
    if length % 128 == 0:
        # Production path: lane rotate on the XLU (free slot, no VMEM copies).
        return pltpu.roll(v, shift, axis=v.ndim - 1)
    # Tiny / unaligned L (e.g. the unit-test shape): lane-slice concat.  At
    # these sizes the copy is negligible and it is guaranteed to lower.
    return jnp.concatenate([v[..., length - shift:], v[..., :length - shift]],
                           axis=-1)


def basic_block_kernel(x_ref, w1_ref, b1_ref, w2_ref, b2_ref,
                       fc1_ref, fc2_ref, out_ref):
    """Processes one (bt, C, L) NCL batch tile.

    x_ref  : (bt, C, L) f32 input tile (also the residual identity)
    w1_ref : (3, C, C)  f32 conv1 weights, BN1 scale folded; [tap, out_ch, in_ch]
    b1_ref : (C, 1)     f32 folded BN1 bias
    w2_ref : (3, C, C)  f32 conv2 weights, BN2 scale folded
    b2_ref : (C, 1)     f32 folded BN2 bias
    fc1_ref: (Crp, C)   f32 SE squeeze Linear weight (zero-padded hidden dim)
    fc2_ref: (C, Crp)   f32 SE excite Linear weight
    out_ref: (bt, C, L) f32 output tile
    """
    bt, C, L = x_ref.shape

    # Hoisted once per tile: boundary masks for the +/-1 taps (conv padding=1)
    # and all weights (reused for every batch element in the tile).
    lane = lax.broadcasted_iota(jnp.int32, (C, L), 1)
    not_first = lane > 0
    not_last = lane < (L - 1)
    w1m, w1c, w1p = w1_ref[0], w1_ref[1], w1_ref[2]
    w2m, w2c, w2p = w2_ref[0], w2_ref[1], w2_ref[2]
    b1 = b1_ref[...]
    b2 = b2_ref[...]
    fc1 = fc1_ref[...]
    fc2 = fc2_ref[...]

    def conv3(v, wm, wc, wp, bias):
        # out[o, l] = sum_i wm[o,i]*v[i,l-1] + wc[o,i]*v[i,l] + wp[o,i]*v[i,l+1] + bias[o]
        vm1 = jnp.where(not_first, _shift_lanes(v, 1, L), 0.0)      # v[:, l-1]
        vp1 = jnp.where(not_last, _shift_lanes(v, L - 1, L), 0.0)   # v[:, l+1]
        acc = jnp.dot(wm, vm1, preferred_element_type=jnp.float32)
        acc = acc + jnp.dot(wc, v, preferred_element_type=jnp.float32)
        acc = acc + jnp.dot(wp, vp1, preferred_element_type=jnp.float32)
        return acc + bias

    for i in range(bt):          # bt is small and static; weights stay hoisted
        x = x_ref[i]                                       # (C, L), L on lanes
        h = jnp.maximum(conv3(x, w1m, w1c, w1p, b1), 0.0)  # conv1 + BN1 + ReLU
        o = conv3(h, w2m, w2c, w2p, b2)                    # conv2 + BN2

        # SE gate: global average pool over L (lane reduce), 2-layer MLP on a
        # (C, 1) channel column (channels stay on sublanes, no transposes).
        y = jnp.mean(o, axis=1, keepdims=True)                               # (C, 1)
        z = jnp.maximum(jnp.dot(fc1, y, preferred_element_type=jnp.float32), 0.0)
        g = jax.nn.sigmoid(jnp.dot(fc2, z, preferred_element_type=jnp.float32))

        # Gate, identity residual (stride 1, Cin == Cout), final ReLU. f32 epilogue.
        out_ref[i] = jnp.maximum(o * g + x, 0.0)


def _pick_batch_tile(B, C, L):
    """Largest divisor of B that keeps >=2 grid steps (v7x dual-TC / pipeline
    overlap) and <= ~2 MiB f32 activation tile (v7x 64 MiB VMEM headroom)."""
    max_elems = (2 * 1024 * 1024) // 4
    best = 1
    for cand in range(1, B + 1):
        if B % cand:
            continue
        if B >= 2 and B // cand < 2:
            continue
        if cand * C * L > max_elems:
            continue
        best = cand
    return best


def basic_block_1d(x_ncl, params, *, bt=None):
    """x_ncl: (B, C, L) float32 (PyTorch NCL layout). Returns (B, C, L)."""
    B, C, L = x_ncl.shape
    if bt is None:
        bt = _pick_batch_tile(B, C, L)
    assert B % bt == 0

    w1, b1 = params["w1"], params["b1"]
    w2, b2 = params["w2"], params["b2"]
    fc1, fc2 = params["fc1"], params["fc2"]
    crp = fc1.shape[0]

    # Rough per-step VMEM need (activation double buffers + weights + temps);
    # only raise the scoped limit when the smallest default (16 MiB, v5e) is
    # too small.  Sweep bt upward on v5e/v6e for large workloads.
    tile_bytes = bt * C * L * 4
    weight_bytes = (2 * 3 * C * C + 2 * C + 2 * crp * C) * 4
    est = 6 * tile_bytes + 2 * weight_bytes + (2 << 20)
    vmem_limit = est if est > (16 << 20) else None

    def build(single_buffer_weights):
        pm = pl.Buffered(1) if single_buffer_weights else None

        def const(shape):
            idx = lambda b: (0,) * len(shape)
            if pm is None:
                return pl.BlockSpec(shape, idx)
            # Grid-invariant operands: double-buffering them is pure VMEM waste.
            return pl.BlockSpec(shape, idx, pipeline_mode=pm)

        return pl.pallas_call(
            basic_block_kernel,
            out_shape=jax.ShapeDtypeStruct((B, C, L), jnp.float32),
            grid_spec=pltpu.PrefetchScalarGridSpec(
                num_scalar_prefetch=0,
                grid=(B // bt,),
                in_specs=[
                    pl.BlockSpec((bt, C, L), lambda b: (b, 0, 0)),   # x tile
                    const((3, C, C)), const((C, 1)),                 # w1, b1
                    const((3, C, C)), const((C, 1)),                 # w2, b2
                    const((crp, C)), const((C, crp)),                # fc1, fc2
                ],
                out_specs=pl.BlockSpec((bt, C, L), lambda b: (b, 0, 0)),
            ),
            compiler_params=pltpu.CompilerParams(
                dimension_semantics=("parallel",),
                vmem_limit_bytes=vmem_limit),
        )

    args = (x_ncl, w1, b1, w2, b2, fc1, fc2)
    try:
        out = build(True)(*args)
        return jax.block_until_ready(out)   # no-op under jit; surfaces errors eagerly
    except Exception:
        # Older JAX without pipeline_mode=pl.Buffered(1) support on pallas_call.
        return build(False)(*args)


# --------------------------- reference (pure JAX, f32) ---------------------------
def basic_block_1d_ref(x_ncl, params):
    conv = lambda x, w: lax.conv_general_dilated(
        x, w, window_strides=(1,), padding=[(1, 1)],
        dimension_numbers=("NCH", "OIH", "NCH"))
    s1, b1 = params["s1"], params["b1_vec"]
    s2, b2 = params["s2"], params["b2_vec"]

    h = conv(x_ncl, params["w1_oik"])
    h = jnp.maximum(h * s1[None, :, None] + b1[None, :, None], 0.0)
    o = conv(h, params["w2_oik"])
    o = o * s2[None, :, None] + b2[None, :, None]
    y = jnp.mean(o, axis=2)                              # (B, C)  AdaptiveAvgPool1d(1)
    y = jnp.maximum(y @ params["fc1"].T, 0.0)            # (B, Crp)
    y = jax.nn.sigmoid(y @ params["fc2"].T)              # (B, C)
    return jnp.maximum(o * y[:, :, None] + x_ncl, 0.0)


# --------------------------- parameter construction ---------------------------
def make_params(key, channels, reduction=16, eps=1e-5):
    C = channels
    Cr = max(C // reduction, 1)
    Crp = max(8, Cr)   # pad SE hidden dim for clean sublane layout (zero rows/cols => identical math)
    ks = jax.random.split(key, 12)

    # PyTorch Conv1d weight layout: (out_ch, in_ch, k)
    w1_oik = jax.random.normal(ks[0], (C, C, 3), jnp.float32) * 0.1
    w2_oik = jax.random.normal(ks[1], (C, C, 3), jnp.float32) * 0.1

    def bn_fold(kg, kb, km, kv):
        gamma = 1.0 + 0.1 * jax.random.normal(kg, (C,), jnp.float32)
        beta = 0.1 * jax.random.normal(kb, (C,), jnp.float32)
        mean = 0.1 * jax.random.normal(km, (C,), jnp.float32)
        var = jax.nn.softplus(jax.random.normal(kv, (C,), jnp.float32)) + 0.5
        scale = gamma / jnp.sqrt(var + eps)
        bias = beta - mean * scale
        return scale, bias

    s1, b1 = bn_fold(ks[2], ks[3], ks[4], ks[5])
    s2, b2 = bn_fold(ks[6], ks[7], ks[8], ks[9])

    # SE: Linear(C, Cr, bias=False) -> ReLU -> Linear(Cr, C, bias=False) -> sigmoid
    # Weights kept in nn.Linear (out_features, in_features) orientation so the
    # kernel can apply them to (C, 1) channel columns without any transpose.
    fc1_small = jax.random.normal(ks[10], (Cr, C), jnp.float32) * 0.2
    fc2_small = jax.random.normal(ks[11], (C, Cr), jnp.float32) * 0.2
    fc1 = jnp.zeros((Crp, C), jnp.float32).at[:Cr, :].set(fc1_small)
    fc2 = jnp.zeros((C, Crp), jnp.float32).at[:, :Cr].set(fc2_small)

    # Kernel prep: fold BN scale into the conv weights and reorder to
    # (tap, out_ch, in_ch) so each tap is a ready-to-use (C, C) matmul LHS.
    def fold(w_oik, scale):
        return jnp.transpose(w_oik * scale[:, None, None], (2, 0, 1))

    return dict(
        # kernel params
        w1=fold(w1_oik, s1), b1=b1[:, None],
        w2=fold(w2_oik, s2), b2=b2[:, None],
        fc1=fc1, fc2=fc2,
        # reference (unfolded, f32) params
        w1_oik=w1_oik, w2_oik=w2_oik,
        s1=s1, b1_vec=b1, s2=s2, b2_vec=b2,
    )


if __name__ == "__main__":
    key = jax.random.PRNGKey(0)
    kx, kp = jax.random.split(key)

    B, C, L = 2, 32, 16   # in_channels == out_channels (identity residual path)
    x = jax.random.normal(kx, (B, C, L), jnp.float32)
    params = make_params(kp, C)

    out = jax.block_until_ready(basic_block_1d(x, params))
    ref = jax.block_until_ready(basic_block_1d_ref(x, params))

    assert out.shape == (B, C, L)
    err = float(jnp.max(jnp.abs(out - ref)))
    assert jnp.allclose(out, ref, atol=1e-3, rtol=1e-3), err
    print("KERNEL_OK")
</pallas_src>

<mosaic_0001>
module attributes {stable_mosaic.version = 11 : i64} {
  func.func @basic_block_kernel(%arg0: i32, %arg1: memref<1x32x16xf32, #tpu.memory_space<vmem>>, %arg2: memref<3x32x32xf32, #tpu.memory_space<vmem>>, %arg3: memref<32x1xf32, #tpu.memory_space<vmem>>, %arg4: memref<3x32x32xf32, #tpu.memory_space<vmem>>, %arg5: memref<32x1xf32, #tpu.memory_space<vmem>>, %arg6: memref<8x32xf32, #tpu.memory_space<vmem>>, %arg7: memref<32x8xf32, #tpu.memory_space<vmem>>, %arg8: memref<1x32x16xf32, #tpu.memory_space<vmem>>) attributes {dimension_semantics = [#tpu.dimension_semantics<parallel>], iteration_bounds = array<i64: 2>, scalar_prefetch = 0 : i64, scratch_operands = 0 : i64, tpu.core_type = #tpu.core_type<tc>, window_params = [{transform_indices = @transform_0, window_bounds = array<i64: 1, 32, 16>}, {pipeline_mode = #tpu.pipeline_mode<synchronous>, transform_indices = @transform_1, window_bounds = array<i64: 3, 32, 32>}, {pipeline_mode = #tpu.pipeline_mode<synchronous>, transform_indices = @transform_2, window_bounds = array<i64: 32, 1>}, {pipeline_mode = #tpu.pipeline_mode<synchronous>, transform_indices = @transform_3, window_bounds = array<i64: 3, 32, 32>}, {pipeline_mode = #tpu.pipeline_mode<synchronous>, transform_indices = @transform_4, window_bounds = array<i64: 32, 1>}, {pipeline_mode = #tpu.pipeline_mode<synchronous>, transform_indices = @transform_5, window_bounds = array<i64: 8, 32>}, {pipeline_mode = #tpu.pipeline_mode<synchronous>, transform_indices = @transform_6, window_bounds = array<i64: 32, 8>}, {transform_indices = @transform_7, window_bounds = array<i64: 1, 32, 16>}]} {
    %0 = tpu.iota {dimensions = array<i32: 1>} : vector<32x16xi32>
    %c0_i32 = arith.constant 0 : i32
    %1 = vector.broadcast %c0_i32 : i32 to vector<32x16xi32>
    %2 = arith.cmpi sgt, %0, %1 : vector<32x16xi32>
    %c15_i32 = arith.constant 15 : i32
    %3 = vector.broadcast %c15_i32 : i32 to vector<32x16xi32>
    %4 = arith.cmpi slt, %0, %3 : vector<32x16xi32>
    %c0 = arith.constant 0 : index
    %c0_0 = arith.constant 0 : index
    %c0_1 = arith.constant 0 : index
    %5 = vector.load %arg2[%c0, %c0_0, %c0_1] : memref<3x32x32xf32, #tpu.memory_space<vmem>>, vector<1x32x32xf32>
    %6 = vector.shape_cast %5 : vector<1x32x32xf32> to vector<32x32xf32>
    %c1 = arith.constant 1 : index
    %c0_2 = arith.constant 0 : index
    %c0_3 = arith.constant 0 : index
    %7 = vector.load %arg2[%c1, %c0_2, %c0_3] : memref<3x32x32xf32, #tpu.memory_space<vmem>>, vector<1x32x32xf32>
    %8 = vector.shape_cast %7 : vector<1x32x32xf32> to vector<32x32xf32>
    %c2 = arith.constant 2 : index
    %c0_4 = arith.constant 0 : index
    %c0_5 = arith.constant 0 : index
    %9 = vector.load %arg2[%c2, %c0_4, %c0_5] : memref<3x32x32xf32, #tpu.memory_space<vmem>>, vector<1x32x32xf32>
    %10 = vector.shape_cast %9 : vector<1x32x32xf32> to vector<32x32xf32>
    %c0_6 = arith.constant 0 : index
    %c0_7 = arith.constant 0 : index
    %c0_8 = arith.constant 0 : index
    %11 = vector.load %arg4[%c0_6, %c0_7, %c0_8] : memref<3x32x32xf32, #tpu.memory_space<vmem>>, vector<1x32x32xf32>
    %12 = vector.shape_cast %11 : vector<1x32x32xf32> to vector<32x32xf32>
    %c1_9 = arith.constant 1 : index
    %c0_10 = arith.constant 0 : index
    %c0_11 = arith.constant 0 : index
    %13 = vector.load %arg4[%c1_9, %c0_10, %c0_11] : memref<3x32x32xf32, #tpu.memory_space<vmem>>, vector<1x32x32xf32>
    %14 = vector.shape_cast %13 : vector<1x32x32xf32> to vector<32x32xf32>
    %c2_12 = arith.constant 2 : index
    %c0_13 = arith.constant 0 : index
    %c0_14 = arith.constant 0 : index
    %15 = vector.load %arg4[%c2_12, %c0_13, %c0_14] : memref<3x32x32xf32, #tpu.memory_space<vmem>>, vector<1x32x32xf32>
    %16 = vector.shape_cast %15 : vector<1x32x32xf32> to vector<32x32xf32>
    %c0_15 = arith.constant 0 : index
    %c0_16 = arith.constant 0 : index
    %17 = vector.load %arg3[%c0_15, %c0_16] : memref<32x1xf32, #tpu.memory_space<vmem>>, vector<32x1xf32>
    %c0_17 = arith.constant 0 : index
    %c0_18 = arith.constant 0 : index
    %18 = vector.load %arg5[%c0_17, %c0_18] : memref<32x1xf32, #tpu.memory_space<vmem>>, vector<32x1xf32>
    %c0_19 = arith.constant 0 : index
    %c0_20 = arith.constant 0 : index
    %19 = vector.load %arg6[%c0_19, %c0_20] : memref<8x32xf32, #tpu.memory_space<vmem>>, vector<8x32xf32>
    %c0_21 = arith.constant 0 : index
    %c0_22 = arith.constant 0 : index
    %20 = vector.load %arg7[%c0_21, %c0_22] : memref<32x8xf32, #tpu.memory_space<vmem>>, vector<32x8xf32>
    %c0_23 = arith.constant 0 : index
    %c0_24 = arith.constant 0 : index
    %c0_25 = arith.constant 0 : index
    %21 = vector.load %arg1[%c0_23, %c0_24, %c0_25] : memref<1x32x16xf32, #tpu.memory_space<vmem>>, vector<1x32x16xf32>
    %22 = vector.shape_cast %21 : vector<1x32x16xf32> to vector<32x16xf32>
    %23 = vector.extract_strided_slice %22 {offsets = [0, 15], sizes = [32, 1], strides = [1, 1]} : vector<32x16xf32> to vector<32x1xf32>
    %24 = vector.extract_strided_slice %22 {offsets = [0, 0], sizes = [32, 15], strides = [1, 1]} : vector<32x16xf32> to vector<32x15xf32>
    %25 = tpu.concatenate %23, %24 in 1 : vector<32x1xf32>, vector<32x15xf32> -> vector<32x16xf32>
    %cst = arith.constant 0.000000e+00 : f32
    %26 = vector.broadcast %cst : f32 to vector<32x16xf32>
    %27 = arith.select %2, %25, %26 : vector<32x16xi1>, vector<32x16xf32>
    %28 = vector.extract_strided_slice %22 {offsets = [0, 1], sizes = [32, 15], strides = [1, 1]} : vector<32x16xf32> to vector<32x15xf32>
    %29 = vector.extract_strided_slice %22 {offsets = [0, 0], sizes = [32, 1], strides = [1, 1]} : vector<32x16xf32> to vector<32x1xf32>
    %30 = tpu.concatenate %28, %29 in 1 : vector<32x15xf32>, vector<32x1xf32> -> vector<32x16xf32>
    %cst_26 = arith.constant 0.000000e+00 : f32
    %31 = vector.broadcast %cst_26 : f32 to vector<32x16xf32>
    %32 = arith.select %4, %30, %31 : vector<32x16xi1>, vector<32x16xf32>
    %cst_27 = arith.constant dense<0.000000e+00> : vector<32x16xf32>
    %33 = tpu.matmul %6, %27, %cst_27 {dimension_numbers = #tpu.dot_dimension_numbers<[1], [0], [0], [1], [0, 0, 1, 1], [], []>} : vector<32x32xf32>, vector<32x16xf32>, vector<32x16xf32> -> vector<32x16xf32>
    %cst_28 = arith.constant dense<0.000000e+00> : vector<32x16xf32>
    %34 = tpu.matmul %8, %22, %cst_28 {dimension_numbers = #tpu.dot_dimension_numbers<[1], [0], [0], [1], [0, 0, 1, 1], [], []>} : vector<32x32xf32>, vector<32x16xf32>, vector<32x16xf32> -> vector<32x16xf32>
    %35 = arith.addf %33, %34 : vector<32x16xf32>
    %cst_29 = arith.constant dense<0.000000e+00> : vector<32x16xf32>
    %36 = tpu.matmul %10, %32, %cst_29 {dimension_numbers = #tpu.dot_dimension_numbers<[1], [0], [0], [1], [0, 0, 1, 1], [], []>} : vector<32x32xf32>, vector<32x16xf32>, vector<32x16xf32> -> vector<32x16xf32>
    %37 = arith.addf %35, %36 : vector<32x16xf32>
    %38 = vector.broadcast %17 : vector<32x1xf32> to vector<32x16xf32>
    %39 = arith.addf %37, %38 : vector<32x16xf32>
    %cst_30 = arith.constant 0.000000e+00 : f32
    %40 = vector.broadcast %cst_30 : f32 to vector<32x16xf32>
    %41 = arith.maximumf %39, %40 : vector<32x16xf32>
    %42 = vector.extract_strided_slice %41 {offsets = [0, 15], sizes = [32, 1], strides = [1, 1]} : vector<32x16xf32> to vector<32x1xf32>
    %43 = vector.extract_strided_slice %41 {offsets = [0, 0], sizes = [32, 15], strides = [1, 1]} : vector<32x16xf32> to vector<32x15xf32>
    %44 = tpu.concatenate %42, %43 in 1 : vector<32x1xf32>, vector<32x15xf32> -> vector<32x16xf32>
    %cst_31 = arith.constant 0.000000e+00 : f32
    %45 = vector.broadcast %cst_31 : f32 to vector<32x16xf32>
    %46 = arith.select %2, %44, %45 : vector<32x16xi1>, vector<32x16xf32>
    %47 = vector.extract_strided_slice %41 {offsets = [0, 1], sizes = [32, 15], strides = [1, 1]} : vector<32x16xf32> to vector<32x15xf32>
    %48 = vector.extract_strided_slice %41 {offsets = [0, 0], sizes = [32, 1], strides = [1, 1]} : vector<32x16xf32> to vector<32x1xf32>
    %49 = tpu.concatenate %47, %48 in 1 : vector<32x15xf32>, vector<32x1xf32> -> vector<32x16xf32>
    %cst_32 = arith.constant 0.000000e+00 : f32
    %50 = vector.broadcast %cst_32 : f32 to vector<32x16xf32>
    %51 = arith.select %4, %49, %50 : vector<32x16xi1>, vector<32x16xf32>
    %cst_33 = arith.constant dense<0.000000e+00> : vector<32x16xf32>
    %52 = tpu.matmul %12, %46, %cst_33 {dimension_numbers = #tpu.dot_dimension_numbers<[1], [0], [0], [1], [0, 0, 1, 1], [], []>} : vector<32x32xf32>, vector<32x16xf32>, vector<32x16xf32> -> vector<32x16xf32>
    %cst_34 = arith.constant dense<0.000000e+00> : vector<32x16xf32>
    %53 = tpu.matmul %14, %41, %cst_34 {dimension_numbers = #tpu.dot_dimension_numbers<[1], [0], [0], [1], [0, 0, 1, 1], [], []>} : vector<32x32xf32>, vector<32x16xf32>, vector<32x16xf32> -> vector<32x16xf32>
    %54 = arith.addf %52, %53 : vector<32x16xf32>
    %cst_35 = arith.constant dense<0.000000e+00> : vector<32x16xf32>
    %55 = tpu.matmul %16, %51, %cst_35 {dimension_numbers = #tpu.dot_dimension_numbers<[1], [0], [0], [1], [0, 0, 1, 1], [], []>} : vector<32x32xf32>, vector<32x16xf32>, vector<32x16xf32> -> vector<32x16xf32>
    %56 = arith.addf %54, %55 : vector<32x16xf32>
    %57 = vector.broadcast %18 : vector<32x1xf32> to vector<32x16xf32>
    %58 = arith.addf %56, %57 : vector<32x16xf32>
    %cst_36 = arith.constant dense<0.000000e+00> : vector<32xf32>
    %59 = vector.multi_reduction <add>, %58, %cst_36 [1] : vector<32x16xf32> to vector<32xf32>
    %60 = vector.shape_cast %59 : vector<32xf32> to vector<32x1xf32>
    %cst_37 = arith.constant 1.600000e+01 : f32
    %61 = vector.broadcast %cst_37 : f32 to vector<32x1xf32>
    %62 = arith.divf %60, %61 : vector<32x1xf32>
    %cst_38 = arith.constant dense<0.000000e+00> : vector<8x1xf32>
    %63 = tpu.matmul %19, %62, %cst_38 {dimension_numbers = #tpu.dot_dimension_numbers<[1], [0], [0], [1], [0, 0, 1, 1], [], []>} : vector<8x32xf32>, vector<32x1xf32>, vector<8x1xf32> -> vector<8x1xf32>
    %cst_39 = arith.constant 0.000000e+00 : f32
    %64 = vector.broadcast %cst_39 : f32 to vector<8x1xf32>
    %65 = arith.maximumf %63, %64 : vector<8x1xf32>
    %cst_40 = arith.constant dense<0.000000e+00> : vector<32x1xf32>
    %66 = tpu.matmul %20, %65, %cst_40 {dimension_numbers = #tpu.dot_dimension_numbers<[1], [0], [0], [1], [0, 0, 1, 1], [], []>} : vector<32x8xf32>, vector<8x1xf32>, vector<32x1xf32> -> vector<32x1xf32>
    %67 = arith.negf %66 : vector<32x1xf32>
    %68 = math.exp %67 : vector<32x1xf32>
    %cst_41 = arith.constant 1.000000e+00 : f32
    %69 = vector.broadcast %cst_41 : f32 to vector<32x1xf32>
    %70 = arith.addf %69, %68 : vector<32x1xf32>
    %71 = arith.divf %69, %70 : vector<32x1xf32>
    %72 = vector.broadcast %71 : vector<32x1xf32> to vector<32x16xf32>
    %73 = arith.mulf %58, %72 : vector<32x16xf32>
    %74 = arith.addf %73, %22 : vector<32x16xf32>
    %cst_42 = arith.constant 0.000000e+00 : f32
    %75 = vector.broadcast %cst_42 : f32 to vector<32x16xf32>
    %76 = arith.maximumf %74, %75 : vector<32x16xf32>
    %c0_43 = arith.constant 0 : index
    %c0_44 = arith.constant 0 : index
    %c0_45 = arith.constant 0 : index
    %77 = vector.load %arg8[%c0_43, %c0_44, %c0_45] : memref<1x32x16xf32, #tpu.memory_space<vmem>>, vector<1x32x16xf32>
    %78 = vector.shape_cast %77 : vector<1x32x16xf32> to vector<32x16xf32>
    %79 = vector.shape_cast %76 : vector<32x16xf32> to vector<1x32x16xf32>
    tpu.vector_store %arg8[%c0_43, %c0_44, %c0_45], %79 {strides = array<i32>} : memref<1x32x16xf32, #tpu.memory_space<vmem>>, vector<1x32x16xf32>,
    return
  }
  func.func @transform_0(%arg0: i32) -> (i32, i32, i32) {
    %c0_i32 = arith.constant 0 : i32
    %c0_i32_0 = arith.constant 0 : i32
    %c0_i32_1 = arith.constant 0 : i32
    return %arg0, %c0_i32, %c0_i32_0 : i32, i32, i32
  }
  func.func @transform_1(%arg0: i32) -> (i32, i32, i32) {
    %c0_i32 = arith.constant 0 : i32
    %c0_i32_0 = arith.constant 0 : i32
    %c0_i32_1 = arith.constant 0 : i32
    %c0_i32_2 = arith.constant 0 : i32
    return %c0_i32, %c0_i32_0, %c0_i32_1 : i32, i32, i32
  }
  func.func @transform_2(%arg0: i32) -> (i32, i32) {
    %c0_i32 = arith.constant 0 : i32
    %c0_i32_0 = arith.constant 0 : i32
    %c0_i32_1 = arith.constant 0 : i32
    return %c0_i32, %c0_i32_0 : i32, i32
  }
  func.func @transform_3(%arg0: i32) -> (i32, i32, i32) {
    %c0_i32 = arith.constant 0 : i32
    %c0_i32_0 = arith.constant 0 : i32
    %c0_i32_1 = arith.constant 0 : i32
    %c0_i32_2 = arith.constant 0 : i32
    return %c0_i32, %c0_i32_0, %c0_i32_1 : i32, i32, i32
  }
  func.func @transform_4(%arg0: i32) -> (i32, i32) {
    %c0_i32 = arith.constant 0 : i32
    %c0_i32_0 = arith.constant 0 : i32
    %c0_i32_1 = arith.constant 0 : i32
    return %c0_i32, %c0_i32_0 : i32, i32
  }
  func.func @transform_5(%arg0: i32) -> (i32, i32) {
    %c0_i32 = arith.constant 0 : i32
    %c0_i32_0 = arith.constant 0 : i32
    %c0_i32_1 = arith.constant 0 : i32
    return %c0_i32, %c0_i32_0 : i32, i32
  }
  func.func @transform_6(%arg0: i32) -> (i32, i32) {
    %c0_i32 = arith.constant 0 : i32
    %c0_i32_0 = arith.constant 0 : i32
    %c0_i32_1 = arith.constant 0 : i32
    return %c0_i32, %c0_i32_0 : i32, i32
  }
  func.func @transform_7(%arg0: i32) -> (i32, i32, i32) {
    %c0_i32 = arith.constant 0 : i32
    %c0_i32_0 = arith.constant 0 : i32
    %c0_i32_1 = arith.constant 0 : i32
    return %arg0, %c0_i32, %c0_i32_0 : i32, i32, i32
  }
}

module attributes {stable_mosaic.version = 11 : i64} {
  func.func @basic_block_kernel(%arg0: i32, %arg1: memref<1x32x16xf32, #tpu.memory_space<vmem>>, %arg2: memref<3x32x32xf32, #tpu.memory_space<vmem>>, %arg3: memref<32x1xf32, #tpu.memory_space<vmem>>, %arg4: memref<3x32x32xf32, #tpu.memory_space<vmem>>, %arg5: memref<32x1xf32, #tpu.memory_space<vmem>>, %arg6: memref<8x32xf32, #tpu.memory_space<vmem>>, %arg7: memref<32x8xf32, #tpu.memory_space<vmem>>, %arg8: memref<1x32x16xf32, #tpu.memory_space<vmem>>) attributes {dimension_semantics = [#tpu.dimension_semantics<parallel>], iteration_bounds = array<i64: 2>, scalar_prefetch = 0 : i64, scratch_operands = 0 : i64, tpu.core_type = #tpu.core_type<tc>, window_params = [{transform_indices = @transform_0, window_bounds = array<i64: 1, 32, 16>}, {pipeline_mode = #tpu.pipeline_mode<synchronous>, transform_indices = @transform_1, window_bounds = array<i64: 3, 32, 32>}, {pipeline_mode = #tpu.pipeline_mode<synchronous>, transform_indices = @transform_2, window_bounds = array<i64: 32, 1>}, {pipeline_mode = #tpu.pipeline_mode<synchronous>, transform_indices = @transform_3, window_bounds = array<i64: 3, 32, 32>}, {pipeline_mode = #tpu.pipeline_mode<synchronous>, transform_indices = @transform_4, window_bounds = array<i64: 32, 1>}, {pipeline_mode = #tpu.pipeline_mode<synchronous>, transform_indices = @transform_5, window_bounds = array<i64: 8, 32>}, {pipeline_mode = #tpu.pipeline_mode<synchronous>, transform_indices = @transform_6, window_bounds = array<i64: 32, 8>}, {transform_indices = @transform_7, window_bounds = array<i64: 1, 32, 16>}]} {
    %0 = tpu.iota {dimensions = array<i32: 1>} : vector<32x16xi32>
    %c0_i32 = arith.constant 0 : i32
    %1 = vector.broadcast %c0_i32 : i32 to vector<32x16xi32>
    %2 = arith.cmpi sgt, %0, %1 : vector<32x16xi32>
    %c15_i32 = arith.constant 15 : i32
    %3 = vector.broadcast %c15_i32 : i32 to vector<32x16xi32>
    %4 = arith.cmpi slt, %0, %3 : vector<32x16xi32>
    %c0 = arith.constant 0 : index
    %c0_0 = arith.constant 0 : index
    %c0_1 = arith.constant 0 : index
    %5 = vector.load %arg2[%c0, %c0_0, %c0_1] : memref<3x32x32xf32, #tpu.memory_space<vmem>>, vector<1x32x32xf32>
    %6 = vector.shape_cast %5 : vector<1x32x32xf32> to vector<32x32xf32>
    %c1 = arith.constant 1 : index
    %c0_2 = arith.constant 0 : index
    %c0_3 = arith.constant 0 : index
    %7 = vector.load %arg2[%c1, %c0_2, %c0_3] : memref<3x32x32xf32, #tpu.memory_space<vmem>>, vector<1x32x32xf32>
    %8 = vector.shape_cast %7 : vector<1x32x32xf32> to vector<32x32xf32>
    %c2 = arith.constant 2 : index
    %c0_4 = arith.constant 0 : index
    %c0_5 = arith.constant 0 : index
    %9 = vector.load %arg2[%c2, %c0_4, %c0_5] : memref<3x32x32xf32, #tpu.memory_space<vmem>>, vector<1x32x32xf32>
    %10 = vector.shape_cast %9 : vector<1x32x32xf32> to vector<32x32xf32>
    %c0_6 = arith.constant 0 : index
    %c0_7 = arith.constant 0 : index
    %c0_8 = arith.constant 0 : index
    %11 = vector.load %arg4[%c0_6, %c0_7, %c0_8] : memref<3x32x32xf32, #tpu.memory_space<vmem>>, vector<1x32x32xf32>
    %12 = vector.shape_cast %11 : vector<1x32x32xf32> to vector<32x32xf32>
    %c1_9 = arith.constant 1 : index
    %c0_10 = arith.constant 0 : index
    %c0_11 = arith.constant 0 : index
    %13 = vector.load %arg4[%c1_9, %c0_10, %c0_11] : memref<3x32x32xf32, #tpu.memory_space<vmem>>, vector<1x32x32xf32>
    %14 = vector.shape_cast %13 : vector<1x32x32xf32> to vector<32x32xf32>
    %c2_12 = arith.constant 2 : index
    %c0_13 = arith.constant 0 : index
    %c0_14 = arith.constant 0 : index
    %15 = vector.load %arg4[%c2_12, %c0_13, %c0_14] : memref<3x32x32xf32, #tpu.memory_space<vmem>>, vector<1x32x32xf32>
    %16 = vector.shape_cast %15 : vector<1x32x32xf32> to vector<32x32xf32>
    %c0_15 = arith.constant 0 : index
    %c0_16 = arith.constant 0 : index
    %17 = vector.load %arg3[%c0_15, %c0_16] : memref<32x1xf32, #tpu.memory_space<vmem>>, vector<32x1xf32>
    %c0_17 = arith.constant 0 : index
    %c0_18 = arith.constant 0 : index
    %18 = vector.load %arg5[%c0_17, %c0_18] : memref<32x1xf32, #tpu.memory_space<vmem>>, vector<32x1xf32>
    %c0_19 = arith.constant 0 : index
    %c0_20 = arith.constant 0 : index
    %19 = vector.load %arg6[%c0_19, %c0_20] : memref<8x32xf32, #tpu.memory_space<vmem>>, vector<8x32xf32>
    %c0_21 = arith.constant 0 : index
    %c0_22 = arith.constant 0 : index
    %20 = vector.load %arg7[%c0_21, %c0_22] : memref<32x8xf32, #tpu.memory_space<vmem>>, vector<32x8xf32>
    %c0_23 = arith.constant 0 : index
    %c0_24 = arith.constant 0 : index
    %c0_25 = arith.constant 0 : index
    %21 = vector.load %arg1[%c0_23, %c0_24, %c0_25] : memref<1x32x16xf32, #tpu.memory_space<vmem>>, vector<1x32x16xf32>
    %22 = vector.shape_cast %21 : vector<1x32x16xf32> to vector<32x16xf32>
    %23 = vector.extract_strided_slice %22 {offsets = [0, 15], sizes = [32, 1], strides = [1, 1]} : vector<32x16xf32> to vector<32x1xf32>
    %24 = vector.extract_strided_slice %22 {offsets = [0, 0], sizes = [32, 15], strides = [1, 1]} : vector<32x16xf32> to vector<32x15xf32>
    %25 = tpu.concatenate %23, %24 in 1 : vector<32x1xf32>, vector<32x15xf32> -> vector<32x16xf32>
    %cst = arith.constant 0.000000e+00 : f32
    %26 = vector.broadcast %cst : f32 to vector<32x16xf32>
    %27 = arith.select %2, %25, %26 : vector<32x16xi1>, vector<32x16xf32>
    %28 = vector.extract_strided_slice %22 {offsets = [0, 1], sizes = [32, 15], strides = [1, 1]} : vector<32x16xf32> to vector<32x15xf32>
    %29 = vector.extract_strided_slice %22 {offsets = [0, 0], sizes = [32, 1], strides = [1, 1]} : vector<32x16xf32> to vector<32x1xf32>
    %30 = tpu.concatenate %28, %29 in 1 : vector<32x15xf32>, vector<32x1xf32> -> vector<32x16xf32>
    %cst_26 = arith.constant 0.000000e+00 : f32
    %31 = vector.broadcast %cst_26 : f32 to vector<32x16xf32>
    %32 = arith.select %4, %30, %31 : vector<32x16xi1>, vector<32x16xf32>
    %cst_27 = arith.constant dense<0.000000e+00> : vector<32x16xf32>
    %33 = tpu.matmul %6, %27, %cst_27 {dimension_numbers = #tpu.dot_dimension_numbers<[1], [0], [0], [1], [0, 0, 1, 1], [], []>} : vector<32x32xf32>, vector<32x16xf32>, vector<32x16xf32> -> vector<32x16xf32>
    %cst_28 = arith.constant dense<0.000000e+00> : vector<32x16xf32>
    %34 = tpu.matmul %8, %22, %cst_28 {dimension_numbers = #tpu.dot_dimension_numbers<[1], [0], [0], [1], [0, 0, 1, 1], [], []>} : vector<32x32xf32>, vector<32x16xf32>, vector<32x16xf32> -> vector<32x16xf32>
    %35 = arith.addf %33, %34 : vector<32x16xf32>
    %cst_29 = arith.constant dense<0.000000e+00> : vector<32x16xf32>
    %36 = tpu.matmul %10, %32, %cst_29 {dimension_numbers = #tpu.dot_dimension_numbers<[1], [0], [0], [1], [0, 0, 1, 1], [], []>} : vector<32x32xf32>, vector<32x16xf32>, vector<32x16xf32> -> vector<32x16xf32>
    %37 = arith.addf %35, %36 : vector<32x16xf32>
    %38 = vector.broadcast %17 : vector<32x1xf32> to vector<32x16xf32>
    %39 = arith.addf %37, %38 : vector<32x16xf32>
    %cst_30 = arith.constant 0.000000e+00 : f32
    %40 = vector.broadcast %cst_30 : f32 to vector<32x16xf32>
    %41 = arith.maximumf %39, %40 : vector<32x16xf32>
    %42 = vector.extract_strided_slice %41 {offsets = [0, 15], sizes = [32, 1], strides = [1, 1]} : vector<32x16xf32> to vector<32x1xf32>
    %43 = vector.extract_strided_slice %41 {offsets = [0, 0], sizes = [32, 15], strides = [1, 1]} : vector<32x16xf32> to vector<32x15xf32>
    %44 = tpu.concatenate %42, %43 in 1 : vector<32x1xf32>, vector<32x15xf32> -> vector<32x16xf32>
    %cst_31 = arith.constant 0.000000e+00 : f32
    %45 = vector.broadcast %cst_31 : f32 to vector<32x16xf32>
    %46 = arith.select %2, %44, %45 : vector<32x16xi1>, vector<32x16xf32>
    %47 = vector.extract_strided_slice %41 {offsets = [0, 1], sizes = [32, 15], strides = [1, 1]} : vector<32x16xf32> to vector<32x15xf32>
    %48 = vector.extract_strided_slice %41 {offsets = [0, 0], sizes = [32, 1], strides = [1, 1]} : vector<32x16xf32> to vector<32x1xf32>
    %49 = tpu.concatenate %47, %48 in 1 : vector<32x15xf32>, vector<32x1xf32> -> vector<32x16xf32>
    %cst_32 = arith.constant 0.000000e+00 : f32
    %50 = vector.broadcast %cst_32 : f32 to vector<32x16xf32>
    %51 = arith.select %4, %49, %50 : vector<32x16xi1>, vector<32x16xf32>
    %cst_33 = arith.constant dense<0.000000e+00> : vector<32x16xf32>
    %52 = tpu.matmul %12, %46, %cst_33 {dimension_numbers = #tpu.dot_dimension_numbers<[1], [0], [0], [1], [0, 0, 1, 1], [], []>} : vector<32x32xf32>, vector<32x16xf32>, vector<32x16xf32> -> vector<32x16xf32>
    %cst_34 = arith.constant dense<0.000000e+00> : vector<32x16xf32>
    %53 = tpu.matmul %14, %41, %cst_34 {dimension_numbers = #tpu.dot_dimension_numbers<[1], [0], [0], [1], [0, 0, 1, 1], [], []>} : vector<32x32xf32>, vector<32x16xf32>, vector<32x16xf32> -> vector<32x16xf32>
    %54 = arith.addf %52, %53 : vector<32x16xf32>
    %cst_35 = arith.constant dense<0.000000e+00> : vector<32x16xf32>
    %55 = tpu.matmul %16, %51, %cst_35 {dimension_numbers = #tpu.dot_dimension_numbers<[1], [0], [0], [1], [0, 0, 1, 1], [], []>} : vector<32x32xf32>, vector<32x16xf32>, vector<32x16xf32> -> vector<32x16xf32>
    %56 = arith.addf %54, %55 : vector<32x16xf32>
    %57 = vector.broadcast %18 : vector<32x1xf32> to vector<32x16xf32>
    %58 = arith.addf %56, %57 : vector<32x16xf32>
    %cst_36 = arith.constant dense<0.000000e+00> : vector<32xf32>
    %59 = vector.multi_reduction <add>, %58, %cst_36 [1] : vector<32x16xf32> to vector<32xf32>
    %60 = vector.shape_cast %59 : vector<32xf32> to vector<32x1xf32>
    %cst_37 = arith.constant 1.600000e+01 : f32
    %61 = vector.broadcast %cst_37 : f32 to vector<32x1xf32>
    %62 = arith.divf %60, %61 : vector<32x1xf32>
    %cst_38 = arith.constant dense<0.000000e+00> : vector<8x1xf32>
    %63 = tpu.matmul %19, %62, %cst_38 {dimension_numbers = #tpu.dot_dimension_numbers<[1], [0], [0], [1], [0, 0, 1, 1], [], []>} : vector<8x32xf32>, vector<32x1xf32>, vector<8x1xf32> -> vector<8x1xf32>
    %cst_39 = arith.constant 0.000000e+00 : f32
    %64 = vector.broadcast %cst_39 : f32 to vector<8x1xf32>
    %65 = arith.maximumf %63, %64 : vector<8x1xf32>
    %cst_40 = arith.constant dense<0.000000e+00> : vector<32x1xf32>
    %66 = tpu.matmul %20, %65, %cst_40 {dimension_numbers = #tpu.dot_dimension_numbers<[1], [0], [0], [1], [0, 0, 1, 1], [], []>} : vector<32x8xf32>, vector<8x1xf32>, vector<32x1xf32> -> vector<32x1xf32>
    %67 = arith.negf %66 : vector<32x1xf32>
    %68 = math.exp %67 : vector<32x1xf32>
    %cst_41 = arith.constant 1.000000e+00 : f32
    %69 = vector.broadcast %cst_41 : f32 to vector<32x1xf32>
    %70 = arith.addf %69, %68 : vector<32x1xf32>
    %71 = arith.divf %69, %70 : vector<32x1xf32>
    %72 = vector.broadcast %71 : vector<32x1xf32> to vector<32x16xf32>
    %73 = arith.mulf %58, %72 : vector<32x16xf32>
    %74 = arith.addf %73, %22 : vector<32x16xf32>
    %cst_42 = arith.constant 0.000000e+00 : f32
    %75 = vector.broadcast %cst_42 : f32 to vector<32x16xf32>
    %76 = arith.maximumf %74, %75 : vector<32x16xf32>
    %c0_43 = arith.constant 0 : index
    %c0_44 = arith.constant 0 : index
    %c0_45 = arith.constant 0 : index
    %77 = vector.load %arg8[%c0_43, %c0_44, %c0_45] : memref<1x32x16xf32, #tpu.memory_space<vmem>>, vector<1x32x16xf32>
    %78 = vector.shape_cast %77 : vector<1x32x16xf32> to vector<32x16xf32>
    %79 = vector.shape_cast %76 : vector<32x16xf32> to vector<1x32x16xf32>
    tpu.vector_store %arg8[%c0_43, %c0_44, %c0_45], %79 {strides = array<i32>} : memref<1x32x16xf32, #tpu.memory_space<vmem>>, vector<1x32x16xf32>,
    return
  }
  func.func @transform_0(%arg0: i32) -> (i32, i32, i32) {
    %c0_i32 = arith.constant 0 : i32
    %c0_i32_0 = arith.constant 0 : i32
    %c0_i32_1 = arith.constant 0 : i32
    return %arg0, %c0_i32, %c0_i32_0 : i32, i32, i32
  }
  func.func @transform_1(%arg0: i32) -> (i32, i32, i32) {
    %c0_i32 = arith.constant 0 : i32
    %c0_i32_0 = arith.constant 0 : i32
    %c0_i32_1 = arith.constant 0 : i32
    %c0_i32_2 = arith.constant 0 : i32
    return %c0_i32, %c0_i32_0, %c0_i32_1 : i32, i32, i32
  }
  func.func @transform_2(%arg0: i32) -> (i32, i32) {
    %c0_i32 = arith.constant 0 : i32
    %c0_i32_0 = arith.constant 0 : i32
    %c0_i32_1 = arith.constant 0 : i32
    return %c0_i32, %c0_i32_0 : i32, i32
  }
  func.func @transform_3(%arg0: i32) -> (i32, i32, i32) {
    %c0_i32 = arith.constant 0 : i32
    %c0_i32_0 = arith.constant 0 : i32
    %c0_i32_1 = arith.constant 0 : i32
    %c0_i32_2 = arith.constant 0 : i32
    return %c0_i32, %c0_i32_0, %c0_i32_1 : i32, i32, i32
  }
  func.func @transform_4(%arg0: i32) -> (i32, i32) {
    %c0_i32 = arith.constant 0 : i32
    %c0_i32_0 = arith.constant 0 : i32
    %c0_i32_1 = arith.constant 0 : i32
    return %c0_i32, %c0_i32_0 : i32, i32
  }
  func.func @transform_5(%arg0: i32) -> (i32, i32) {
    %c0_i32 = arith.constant 0 : i32
    %c0_i32_0 = arith.constant 0 : i32
    %c0_i32_1 = arith.constant 0 : i32
    return %c0_i32, %c0_i32_0 : i32, i32
  }
  func.func @transform_6(%arg0: i32) -> (i32, i32) {
    %c0_i32 = arith.constant 0 : i32
    %c0_i32_0 = arith.constant 0 : i32
    %c0_i32_1 = arith.constant 0 : i32
    return %c0_i32, %c0_i32_0 : i32, i32
  }
  func.func @transform_7(%arg0: i32) -> (i32, i32, i32) {
    %c0_i32 = arith.constant 0 : i32
    %c0_i32_0 = arith.constant 0 : i32
    %c0_i32_1 = arith.constant 0 : i32
    return %arg0, %c0_i32, %c0_i32_0 : i32, i32, i32
  }
}

</mosaic_0001>

<llo_original>
// kernel: tpu_custom_call.1
$region0: #{tpu_custom_call.1}
  #allocation0 [shape = 'u32[]', space=smem, size = 0x4, offset = 0x4, fixed_abs, tag = 'smem constant byte address 0x4 - core index']
  #allocation1 [shape = 'u32[144,128]{1,0:T(1,128)}', space=vmem, size = 0x12000, scoped, tag = 'internal scratch']
  %s0 = inlined_call_operand.vmem [shape: f32[2,32,16], index: 0, kind: input, shape index: {}]
  %s1 = inlined_call_operand.vmem [shape: f32[3,32,32], index: 1, kind: input, shape index: {}]
  %s2 = inlined_call_operand.vmem [shape: f32[32,1], index: 2, kind: input, shape index: {}]
  %s3 = inlined_call_operand.vmem [shape: f32[3,32,32], index: 3, kind: input, shape index: {}]
  %s4 = inlined_call_operand.vmem [shape: f32[32,1], index: 4, kind: input, shape index: {}]
  %s5 = inlined_call_operand.vmem [shape: f32[8,32], index: 5, kind: input, shape index: {}]
  %s6 = inlined_call_operand.vmem [shape: f32[32,8], index: 6, kind: input, shape index: {}]
  %s7 = inlined_call_operand.vmem [shape: f32[2,32,16], index: 7, kind: output, shape index: {}]
  %s8 = sld [smem:[#allocation0]]
  $region61: #{tpu_custom_call.1} parent=0
    _
  %s10 = ssub.s32 1, %s8
  %s11 = scalar_select 0, %s10, %s8
  loop: start=0, step=1, limit=4
  $region2: #{tpu_custom_call.1} parent=0 // loop_pre_header
    _
  $region3: #{tpu_custom_call.1} parent=0 // loop_header
    %s13 = sphi 0, %s17
    %p14 = scmp.ge.s32.totalorder %s13, 4
    %s23 = sphi 0, %s25
    %s26 = sphi 0, %s23
    %s27 = sphi 0, %s26
    %s43 = sphi 0, %s27
    %s47 = sphi 0, %s47
    %s49 = sphi 0, %s47
    %s50 = sphi 0, %s49
    %s64 = sphi 0, %s50
    %s68 = sphi 0, %s68
    %s70 = sphi 0, %s68
    %s71 = sphi 0, %s70
    %s85 = sphi 0, %s71
    %s89 = sphi 0, %s89
    %s91 = sphi 0, %s89
    %s92 = sphi 0, %s91
    %s106 = sphi 0, %s92
    %s110 = sphi 0, %s110
    %s112 = sphi 0, %s110
    %s113 = sphi 0, %s112
    %s127 = sphi 0, %s113
    %s131 = sphi 0, %s131
    %s133 = sphi 0, %s131
    %s134 = sphi 0, %s133
    %s148 = sphi 0, %s134
    %s152 = sphi 0, %s152
    %s154 = sphi 0, %s152
    %s155 = sphi 0, %s154
    %s169 = sphi 0, %s155
    %s175 = sphi 0, %s177
    %s178 = sphi 0, %s175
    %s179 = sphi 0, %s178
    %s195 = sphi 0, %s179
  $region4: #{tpu_custom_call.1} parent=0 // loop_header_branch
    %16 = sbr.rel (%p14) target = $region8
  $region5: #{tpu_custom_call.1} parent=0 // loop_body
    %s18 = ssub.s32 %s13, 1
    %s19 = ssub.s32 %s13, 2
    %s20 = sadd.s32 %s13, 1
    %s21 = ssub.s32 %s13, %s20
    %p22 = scmp.eq.s32.totalorder %s21, 0
    %s24 = sadd.s32 %s23, 1
    %s25 = scalar_select %p22, %s23, %s24
    %p28 = pneg %p22
    %p29 = scmp.eq.s32.totalorder %s13, 1
    %p30 = por %p28, %p29
    %p31 = scmp.ne.s32.totalorder %s23, %s26
    %p32 = scmp.eq.s32.totalorder %s13, 0
    %p33 = por %p31, %p32
    %p34 = scmp.ne.s32.totalorder %s23, %s26
    %p35 = scmp.eq.s32.totalorder %s18, 1
    %p36 = por %p34, %p35
    %p37 = scmp.ne.s32.totalorder %s26, %s27
    %p38 = scmp.eq.s32.totalorder %s18, 0
    %p39 = por %p37, %p38
    %p40 = scmp.ne.s32.totalorder %s26, %s27
    %p41 = scmp.eq.s32.totalorder %s19, 1
    %p42 = por %p40, %p41
    %p44 = scmp.ne.s32.totalorder %s27, %s43
    %p45 = scmp.eq.s32.totalorder %s19, 0
    %p46 = por %p44, %p45
    %s48 = sadd.s32 %s47, 1
    %p51 = scmp.eq.s32.totalorder %s13, 1
    %p52 = scmp.ne.s32.totalorder %s47, %s49
    %p53 = scmp.eq.s32.totalorder %s13, 0
    %p54 = por %p52, %p53
    %p55 = scmp.ne.s32.totalorder %s47, %s49
    %p56 = scmp.eq.s32.totalorder %s18, 1
    %p57 = por %p55, %p56
    %p58 = scmp.ne.s32.totalorder %s49, %s50
    %p59 = scmp.eq.s32.totalorder %s18, 0
    %p60 = por %p58, %p59
    %p61 = scmp.ne.s32.totalorder %s49, %s50
    %p62 = scmp.eq.s32.totalorder %s19, 1
    %p63 = por %p61, %p62
    %p65 = scmp.ne.s32.totalorder %s50, %s64
    %p66 = scmp.eq.s32.totalorder %s19, 0
    %p67 = por %p65, %p66
    %s69 = sadd.s32 %s68, 1
    %p72 = scmp.eq.s32.totalorder %s13, 1
    %p73 = scmp.ne.s32.totalorder %s68, %s70
    %p74 = scmp.eq.s32.totalorder %s13, 0
    %p75 = por %p73, %p74
    %p76 = scmp.ne.s32.totalorder %s68, %s70
    %p77 = scmp.eq.s32.totalorder %s18, 1
    %p78 = por %p76, %p77
    %p79 = scmp.ne.s32.totalorder %s70, %s71
    %p80 = scmp.eq.s32.totalorder %s18, 0
    %p81 = por %p79, %p80
    %p82 = scmp.ne.s32.totalorder %s70, %s71
    %p83 = scmp.eq.s32.totalorder %s19, 1
    %p84 = por %p82, %p83
    %p86 = scmp.ne.s32.totalorder %s71, %s85
    %p87 = scmp.eq.s32.totalorder %s19, 0
    %p88 = por %p86, %p87
    %s90 = sadd.s32 %s89, 1
    %p93 = scmp.eq.s32.totalorder %s13, 1
    %p94 = scmp.ne.s32.totalorder %s89, %s91
    %p95 = scmp.eq.s32.totalorder %s13, 0
    %p96 = por %p94, %p95
    %p97 = scmp.ne.s32.totalorder %s89, %s91
    %p98 = scmp.eq.s32.totalorder %s18, 1
    %p99 = por %p97, %p98
    %p100 = scmp.ne.s32.totalorder %s91, %s92
    %p101 = scmp.eq.s32.totalorder %s18, 0
    %p102 = por %p100, %p101
    %p103 = scmp.ne.s32.totalorder %s91, %s92
    %p104 = scmp.eq.s32.totalorder %s19, 1
    %p105 = por %p103, %p104
    %p107 = scmp.ne.s32.totalorder %s92, %s106
    %p108 = scmp.eq.s32.totalorder %s19, 0
    %p109 = por %p107, %p108
    %s111 = sadd.s32 %s110, 1
    %p114 = scmp.eq.s32.totalorder %s13, 1
    %p115 = scmp.ne.s32.totalorder %s110, %s112
    %p116 = scmp.eq.s32.totalorder %s13, 0
    %p117 = por %p115, %p116
    %p118 = scmp.ne.s32.totalorder %s110, %s112
    %p119 = scmp.eq.s32.totalorder %s18, 1
    %p120 = por %p118, %p119
    %p121 = scmp.ne.s32.totalorder %s112, %s113
    %p122 = scmp.eq.s32.totalorder %s18, 0
    %p123 = por %p121, %p122
    %p124 = scmp.ne.s32.totalorder %s112, %s113
    %p125 = scmp.eq.s32.totalorder %s19, 1
    %p126 = por %p124, %p125
    %p128 = scmp.ne.s32.totalorder %s113, %s127
    %p129 = scmp.eq.s32.totalorder %s19, 0
    %p130 = por %p128, %p129
    %s132 = sadd.s32 %s131, 1
    %p135 = scmp.eq.s32.totalorder %s13, 1
    %p136 = scmp.ne.s32.totalorder %s131, %s133
    %p137 = scmp.eq.s32.totalorder %s13, 0
    %p138 = por %p136, %p137
    %p139 = scmp.ne.s32.totalorder %s131, %s133
    %p140 = scmp.eq.s32.totalorder %s18, 1
    %p141 = por %p139, %p140
    %p142 = scmp.ne.s32.totalorder %s133, %s134
    %p143 = scmp.eq.s32.totalorder %s18, 0
    %p144 = por %p142, %p143
    %p145 = scmp.ne.s32.totalorder %s133, %s134
    %p146 = scmp.eq.s32.totalorder %s19, 1
    %p147 = por %p145, %p146
    %p149 = scmp.ne.s32.totalorder %s134, %s148
    %p150 = scmp.eq.s32.totalorder %s19, 0
    %p151 = por %p149, %p150
    %s153 = sadd.s32 %s152, 1
    %p156 = scmp.eq.s32.totalorder %s13, 1
    %p157 = scmp.ne.s32.totalorder %s152, %s154
    %p158 = scmp.eq.s32.totalorder %s13, 0
    %p159 = por %p157, %p158
    %p160 = scmp.ne.s32.totalorder %s152, %s154
    %p161 = scmp.eq.s32.totalorder %s18, 1
    %p162 = por %p160, %p161
    %p163 = scmp.ne.s32.totalorder %s154, %s155
    %p164 = scmp.eq.s32.totalorder %s18, 0
    %p165 = por %p163, %p164
    %p166 = scmp.ne.s32.totalorder %s154, %s155
    %p167 = scmp.eq.s32.totalorder %s19, 1
    %p168 = por %p166, %p167
    %p170 = scmp.ne.s32.totalorder %s155, %s169
    %p171 = scmp.eq.s32.totalorder %s19, 0
    %p172 = por %p170, %p171
    %s173 = ssub.s32 %s13, %s20
    %p174 = scmp.eq.s32.totalorder %s173, 0
    %s176 = sadd.s32 %s175, 1
    %s177 = scalar_select %p174, %s175, %s176
    %p180 = pneg %p174
    %p181 = scmp.eq.s32.totalorder %s13, 1
    %p182 = por %p180, %p181
    %p183 = scmp.ne.s32.totalorder %s175, %s178
    %p184 = scmp.eq.s32.totalorder %s13, 0
    %p185 = por %p183, %p184
    %p186 = scmp.ne.s32.totalorder %s175, %s178
    %p187 = scmp.eq.s32.totalorder %s18, 1
    %p188 = por %p186, %p187
    %p189 = scmp.ne.s32.totalorder %s178, %s179
    %p190 = scmp.eq.s32.totalorder %s18, 0
    %p191 = por %p189, %p190
    %p192 = scmp.ne.s32.totalorder %s178, %s179
    %p193 = scmp.eq.s32.totalorder %s19, 1
    %p194 = por %p192, %p193
    %p196 = scmp.ne.s32.totalorder %s179, %s195
    %p197 = scmp.eq.s32.totalorder %s19, 0
    %p198 = por %p196, %p197
    %p199 = scmp.le.s32.totalorder 1, %s13
    %p200 = scmp.lt.s32.totalorder %s13, 3
    %p201 = pnand %p199, %p200
    %p202 = pneg %p201
    // Predicated region
    $region9: #{tpu_custom_call.1} parent=5 // pred_check
      _
    $region10: #{tpu_custom_call.1} parent=5 // pred_check_branch
      %204 = sbr.rel (%p201) target = $region12
    $region11: #{tpu_custom_call.1} parent=5 // pred_region
      %s205 = ssub.s32 %s13, 1
      // Predicated region
      $region13: #{tpu_custom_call.1} parent=11 // pred_check
        %p206 = pneg %p60
      $region14: #{tpu_custom_call.1} parent=11 // pred_check_branch
        %208 = sbr.rel (%p206) target = $region16
      $region15: #{tpu_custom_call.1} parent=11 // pred_region
        _
      $region16: #{tpu_custom_call.1} parent=11 // pred_fallthru
        _
      // Predicated region
      $region17: #{tpu_custom_call.1} parent=11 // pred_check
        %p209 = pneg %p81
      $region18: #{tpu_custom_call.1} parent=11 // pred_check_branch
        %211 = sbr.rel (%p209) target = $region20
      $region19: #{tpu_custom_call.1} parent=11 // pred_region
        _
      $region20: #{tpu_custom_call.1} parent=11 // pred_fallthru
        _
      // Predicated region
      $region21: #{tpu_custom_call.1} parent=11 // pred_check
        %p212 = pneg %p102
      $region22: #{tpu_custom_call.1} parent=11 // pred_check_branch
        %214 = sbr.rel (%p212) target = $region24
      $region23: #{tpu_custom_call.1} parent=11 // pred_region
        _
      $region24: #{tpu_custom_call.1} parent=11 // pred_fallthru
        _
      // Predicated region
      $region25: #{tpu_custom_call.1} parent=11 // pred_check
        %p215 = pneg %p123
      $region26: #{tpu_custom_call.1} parent=11 // pred_check_branch
        %217 = sbr.rel (%p215) target = $region28
      $region27: #{tpu_custom_call.1} parent=11 // pred_region
        _
      $region28: #{tpu_custom_call.1} parent=11 // pred_fallthru
        _
      // Predicated region
      $region29: #{tpu_custom_call.1} parent=11 // pred_check
        %p218 = pneg %p144
      $region30: #{tpu_custom_call.1} parent=11 // pred_check_branch
        %220 = sbr.rel (%p218) target = $region32
      $region31: #{tpu_custom_call.1} parent=11 // pred_region
        _
      $region32: #{tpu_custom_call.1} parent=11 // pred_fallthru
        _
      // Predicated region
      $region33: #{tpu_custom_call.1} parent=11 // pred_check
        %p221 = pneg %p165
      $region34: #{tpu_custom_call.1} parent=11 // pred_check_branch
        %223 = sbr.rel (%p221) target = $region36
      $region35: #{tpu_custom_call.1} parent=11 // pred_region
        _
      $region36: #{tpu_custom_call.1} parent=11 // pred_fallthru
        _
    $region12: #{tpu_custom_call.1} parent=5 // pred_fallthru
      _
    %p224 = scmp.lt.s32.totalorder %s13, 2
    // Predicated region
    $region37: #{tpu_custom_call.1} parent=5 // pred_check
      %p225 = pneg %p224
    $region38: #{tpu_custom_call.1} parent=5 // pred_check_branch
      %227 = sbr.rel (%p225) target = $region40
    $region39: #{tpu_custom_call.1} parent=5 // pred_region
      // Predicated region
      $region41: #{tpu_custom_call.1} parent=39 // pred_check
        %p228 = pneg %p33
      $region42: #{tpu_custom_call.1} parent=39 // pred_check_branch
        %230 = sbr.rel (%p228) target = $region44
      $region43: #{tpu_custom_call.1} parent=39 // pred_region
        %p231 = scmp.lt.s32.totalorder %s13, 1
        %s232 = scalar_select %p231, %s13, 1
        %s233 = smul.addr %s232, 4
        %s234 = smul.addr %s233, 8
        %s235 = scalar_lea.vmem %s0, %s234
      $region44: #{tpu_custom_call.1} parent=39 // pred_fallthru
        _
    $region40: #{tpu_custom_call.1} parent=5 // pred_fallthru
      _
    %p236 = scmp.le.s32.totalorder 1, %s13
    %p237 = scmp.lt.s32.totalorder %s13, 3
    %p238 = pnand %p236, %p237
    %p239 = pneg %p238
    // Predicated region
    $region45: #{tpu_custom_call.1} parent=5 // pred_check
      _
    $region46: #{tpu_custom_call.1} parent=5 // pred_check_branch
      %241 = sbr.rel (%p238) target = $region48
    $region47: #{tpu_custom_call.1} parent=5 // pred_region
      %s242 = ssub.s32 %s13, 1
      %p243 = scmp.lt.s32.totalorder %s18, 1
      %s244 = scalar_select %p243, %s18, 1
      %s245 = smul.addr %s244, 4
      %s246 = smul.addr %s245, 8
      %s247 = scalar_lea.vmem %s0, %s246
      %p248 = pneg %p39
      %p249 = pneg %p36
      %p250 = pneg %p60
      %p251 = pneg %p57
      %p252 = pneg %p81
      %p253 = pneg %p78
      %p254 = pneg %p102
      %p255 = pneg %p99
      %p256 = pneg %p123
      %p257 = pneg %p120
      %p258 = pneg %p144
      %p259 = pneg %p141
      %p260 = pneg %p165
      %p261 = pneg %p162
      %p262 = pneg %p191
      %p263 = pneg %p188
      %p264 = scmp.lt.s32.totalorder %s18, 1
      %s265 = scalar_select %p264, %s18, 1
      %s266 = smul.addr %s265, 4
      %s267 = smul.addr %s266, 8
      %s268 = scalar_lea.vmem %s7, %s267
      %p269 = scmp.lt.s32.totalorder %s18, 1
      %s270 = scalar_select %p269, %s18, 1
      %s271 = smul.addr %s270, 4
      %s272 = smul.addr %s271, 8
      %s273 = scalar_lea.vmem %s0, %s272
      %p274 = scmp.lt.s32.totalorder %s18, 1
      %s275 = scalar_select %p274, %s18, 1
      %s276 = smul.addr %s275, 4
      %s277 = smul.addr %s276, 8
      %s278 = scalar_lea.vmem %s7, %s277
      %v279 = vlaneseq
      %v280 = vand.u32 %v279, 127
      %vm281 = vcmp.gt.s32.totalorder %v280, 0
      %vm282 = vcmp.lt.s32.totalorder %v280, 15
      %v283 = vld [vmem:[%s1] sm:$0xff]
      %v284 = vld [vmem:[%s1 + $0x8] sm:$0xff]
      %v285 = vld [vmem:[%s1 + $0x10] sm:$0xff]
      %v286 = vld [vmem:[%s1 + $0x18] sm:$0xff]
      %s287 = scalar_lea.vmem %s1, 32
      %v288 = vld [vmem:[%s287] sm:$0xff]
      %v289 = vld [vmem:[%s287 + $0x8] sm:$0xff]
      %v290 = vld [vmem:[%s287 + $0x10] sm:$0xff]
      %v291 = vld [vmem:[%s287 + $0x18] sm:$0xff]
      %s292 = scalar_lea.vmem %s1, 64
      %v293 = vld [vmem:[%s292] sm:$0xff]
      %v294 = vld [vmem:[%s292 + $0x8] sm:$0xff]
      %v295 = vld [vmem:[%s292 + $0x10] sm:$0xff]
      %v296 = vld [vmem:[%s292 + $0x18] sm:$0xff]
      %v297 = vld [vmem:[%s3] sm:$0xff]
      %v298 = vld [vmem:[%s3 + $0x8] sm:$0xff]
      %v299 = vld [vmem:[%s3 + $0x10] sm:$0xff]
      %v300 = vld [vmem:[%s3 + $0x18] sm:$0xff]
      %s301 = scalar_lea.vmem %s3, 32
      %v302 = vld [vmem:[%s301] sm:$0xff]
      %v303 = vld [vmem:[%s301 + $0x8] sm:$0xff]
      %v304 = vld [vmem:[%s301 + $0x10] sm:$0xff]
      %v305 = vld [vmem:[%s301 + $0x18] sm:$0xff]
      %s306 = scalar_lea.vmem %s3, 64
      %v307 = vld [vmem:[%s306] sm:$0xff]
      %v308 = vld [vmem:[%s306 + $0x8] sm:$0xff]
      %v309 = vld [vmem:[%s306 + $0x10] sm:$0xff]
      %v310 = vld [vmem:[%s306 + $0x18] sm:$0xff]
      %v311 = vld [vmem:[%s2] sm:$0xff]
      %v312 = vld [vmem:[%s2 + $0x8] sm:$0xff]
      %v313 = vld [vmem:[%s2 + $0x10] sm:$0xff]
      %v314 = vld [vmem:[%s2 + $0x18] sm:$0xff]
      %v315 = vld [vmem:[%s4] sm:$0xff]
      %v316 = vld [vmem:[%s4 + $0x8] sm:$0xff]
      %v317 = vld [vmem:[%s4 + $0x10] sm:$0xff]
      %v318 = vld [vmem:[%s4 + $0x18] sm:$0xff]
      %v319 = vld [vmem:[%s5] sm:$0xff]
      %v320 = vld [vmem:[%s6] sm:$0xff]
      %v321 = vld [vmem:[%s6 + $0x8] sm:$0xff]
      %v322 = vld [vmem:[%s6 + $0x10] sm:$0xff]
      %v323 = vld [vmem:[%s6 + $0x18] sm:$0xff]
      %v324 = vld [vmem:[%s273] sm:$0xff]
      %v325 = vld [vmem:[%s273 + $0x8] sm:$0xff]
      %v326 = vld [vmem:[%s273 + $0x10] sm:$0xff]
      %v327 = vld [vmem:[%s273 + $0x18] sm:$0xff]
      %332 = vrot.lane.b32.xlu0 %v324, 113
      %v333 = vpop.permute.xlu0 %332
      %334 = vrot.lane.b32.xlu0 %v325, 113
      %v335 = vpop.permute.xlu0 %334
      %336 = vrot.lane.b32.xlu0 %v326, 113
      %v337 = vpop.permute.xlu0 %336
      %338 = vrot.lane.b32.xlu0 %v327, 113
      %v339 = vpop.permute.xlu0 %338
      %344 = vrot.lane.b32.xlu0 %v324, 1
      %v345 = vpop.permute.xlu0 %344
      %346 = vrot.lane.b32.xlu0 %v325, 1
      %v347 = vpop.permute.xlu0 %346
      %348 = vrot.lane.b32.xlu0 %v326, 1
      %v349 = vpop.permute.xlu0 %348
      %350 = vrot.lane.b32.xlu0 %v327, 1
      %v351 = vpop.permute.xlu0 %350
      %vm356 = vcmask 7168
      %v357 = vsel %vm356, %v333, %v345
      %v358 = vsel %vm356, %v335, %v347
      %v359 = vsel %vm356, %v337, %v349
      %v360 = vsel %vm356, %v339, %v351
      %v361 = vsel %vm281, %v357, 0.0
      %v362 = vsel %vm281, %v358, 0.0
      %v363 = vsel %vm281, %v359, 0.0
      %v364 = vsel %vm281, %v360, 0.0
      %365 = vrot.lane.b32.xlu0 %v324, 127
      %v366 = vpop.permute.xlu0 %365
      %367 = vrot.lane.b32.xlu0 %v325, 127
      %v368 = vpop.permute.xlu0 %367
      %369 = vrot.lane.b32.xlu0 %v326, 127
      %v370 = vpop.permute.xlu0 %369
      %371 = vrot.lane.b32.xlu0 %v327, 127
      %v372 = vpop.permute.xlu0 %371
      %377 = vrot.lane.b32.xlu0 %v324, 15
      %v378 = vpop.permute.xlu0 %377
      %379 = vrot.lane.b32.xlu0 %v325, 15
      %v380 = vpop.permute.xlu0 %379
      %381 = vrot.lane.b32.xlu0 %v326, 15
      %v382 = vpop.permute.xlu0 %381
      %383 = vrot.lane.b32.xlu0 %v327, 15
      %v384 = vpop.permute.xlu0 %383
      %vm389 = vcmask 121856
      %v390 = vsel %vm389, %v366, %v378
      %v391 = vsel %vm389, %v368, %v380
      %v392 = vsel %vm389, %v370, %v382
      %v393 = vsel %vm389, %v372, %v384
      %v394 = vsel %vm282, %v390, 0.0
      %v395 = vsel %vm282, %v391, 0.0
      %v396 = vsel %vm282, %v392, 0.0
      %v397 = vsel %vm282, %v393, 0.0
      %vm398 = vcmask 261120
      %v400 = vsel %vm398, %v288, 0
      %v403 = vsel %vm398, %v289, 0
      %v406 = vsel %vm398, %v290, 0
      %v409 = vsel %vm398, %v291, 0
      %411 = vmatprep.subr.mxu0 0.0
      %412 = vmatpush1.msra.mxu0 %v324
      %413 = vmatprep.subr.mxu0 0.0
      %414 = vmatpush1.msra.mxu0 %v325
      %415 = vmatprep.subr.mxu0 0.0
      %416 = vmatpush1.msra.mxu0 %v326
      %417 = vmatprep.subr.mxu0 0.0
      %418 = vmatpush1.msra.mxu0 %v327
      %419 = vmatprep.subr.mxu0 0.0
      %420 = vmatpush1.msra.mxu0 0.0
      %421 = vmatprep.subr.mxu0 0.0
      %422 = vmatpush1.msra.mxu0 0.0
      %423 = vmatprep.subr.mxu0 0.0
      %424 = vmatpush1.msra.mxu0 0.0
      %425 = vmatprep.subr.mxu0 0.0
      %426 = vmatpush1.msra.mxu0 0.0
      %427 = vmatprep.subr.mxu0 0.0
      %428 = vmatpush1.msra.mxu0 0.0
      %429 = vmatprep.subr.mxu0 0.0
      %430 = vmatpush1.msra.mxu0 0.0
      %431 = vmatprep.subr.mxu0 0.0
      %432 = vmatpush1.msra.mxu0 0.0
      %433 = vmatprep.subr.mxu0 0.0
      %434 = vmatpush1.msra.mxu0 0.0
      %435 = vmatprep.subr.mxu0 0.0
      %436 = vmatpush1.msra.mxu0 0.0
      %437 = vmatprep.subr.mxu0 0.0
      %438 = vmatpush1.msra.mxu0 0.0
      %439 = vmatprep.subr.mxu0 0.0
      %440 = vmatpush1.msra.mxu0 0.0
      %441 = vmatprep.subr.mxu0 0.0
      %442 = vmatpush1.msra.mxu0 0.0
      %443 = vmatprep.subr.mxu0 0.0
      %444 = vmatpush1.msra.mxu0 0.0
      %445 = vmatprep.subr.mxu0 0.0
      %446 = vmatpush1.msra.mxu0 0.0
      %447 = vmatprep.subr.mxu0 0.0
      %448 = vmatpush1.msra.mxu0 0.0
      %449 = vmatprep.subr.mxu0 0.0
      %450 = vmatpush1.msra.mxu0 0.0
      %451 = vmatprep.subr.mxu0 0.0
      %452 = vmatpush1.msra.mxu0 0.0
      %453 = vmatprep.subr.mxu0 0.0
      %454 = vmatpush1.msra.mxu0 0.0
      %455 = vmatprep.subr.mxu0 0.0
      %456 = vmatpush1.msra.mxu0 0.0
      %457 = vmatprep.subr.mxu0 0.0
      %458 = vmatpush1.msra.mxu0 0.0
      %459 = vmatprep.subr.mxu0 0.0
      %460 = vmatpush1.msra.mxu0 0.0
      %461 = vmatprep.subr.mxu0 0.0
      %462 = vmatpush1.msra.mxu0 0.0
      %463 = vmatprep.subr.mxu0 0.0
      %464 = vmatpush1.msra.mxu0 0.0
      %465 = vmatprep.subr.mxu0 0.0
      %466 = vmatpush1.msra.mxu0 0.0
      %467 = vmatprep.subr.mxu0 0.0
      %468 = vmatpush1.msra.mxu0 0.0
      %469 = vmatprep.subr.mxu0 0.0
      %470 = vmatpush1.msra.mxu0 0.0
      %471 = vmatprep.subr.mxu0 0.0
      %472 = vmatpush1.msra.mxu0 0.0
      %473 = vmatprep.subr.mxu0 0.0
      %474 = vmatpush1.msra.mxu0 0.0
      %475 = vmatprep.mubr.f32.mxu0 0.0
      %476 = vmatmul.mubr.f32.gmra.mrb[0].mxu0 %v400
      %v477 = vpop.f32.mrb[0].mxu0
      %v478 = vadd.f32 0.0, %v477
      %v479 = vpop.f32.mrb[0].mxu0
      %480 = vmatprep.mubr.f32.mxu0 0.0
      %481 = vmatmul.mubr.f32.gmra.mrb[0].mxu0 %v403
      %v482 = vpop.f32.mrb[0].mxu0
      %v483 = vadd.f32 0.0, %v482
      %v484 = vpop.f32.mrb[0].mxu0
      %485 = vmatprep.mubr.f32.mxu0 0.0
      %486 = vmatmul.mubr.f32.gmra.mrb[0].mxu0 %v406
      %v487 = vpop.f32.mrb[0].mxu0
      %v488 = vadd.f32 0.0, %v487
      %v489 = vpop.f32.mrb[0].mxu0
      %490 = vmatprep.mubr.f32.mxu0 0.0
      %491 = vmatmul.mubr.f32.gmra.mrb[0].mxu0 %v409
      %v492 = vpop.f32.mrb[0].mxu0
      %v493 = vadd.f32 0.0, %v492
      %v494 = vpop.f32.mrb[0].mxu0
      %495 = vdwg.mxu0
      %v497 = vsel %vm398, %v283, 0
      %v500 = vsel %vm398, %v284, 0
      %v503 = vsel %vm398, %v285, 0
      %v506 = vsel %vm398, %v286, 0
      %508 = vmatprep.subr.mxu0 0.0
      %509 = vmatpush1.msra.mxu0 %v361
      %510 = vmatprep.subr.mxu0 0.0
      %511 = vmatpush1.msra.mxu0 %v362
      %512 = vmatprep.subr.mxu0 0.0
      %513 = vmatpush1.msra.mxu0 %v363
      %514 = vmatprep.subr.mxu0 0.0
      %515 = vmatpush1.msra.mxu0 %v364
      %516 = vmatprep.subr.mxu0 0.0
      %517 = vmatpush1.msra.mxu0 0.0
      %518 = vmatprep.subr.mxu0 0.0
      %519 = vmatpush1.msra.mxu0 0.0
      %520 = vmatprep.subr.mxu0 0.0
      %521 = vmatpush1.msra.mxu0 0.0
      %522 = vmatprep.subr.mxu0 0.0
      %523 = vmatpush1.msra.mxu0 0.0
      %524 = vmatprep.subr.mxu0 0.0
      %525 = vmatpush1.msra.mxu0 0.0
      %526 = vmatprep.subr.mxu0 0.0
      %527 = vmatpush1.msra.mxu0 0.0
      %528 = vmatprep.subr.mxu0 0.0
      %529 = vmatpush1.msra.mxu0 0.0
      %530 = vmatprep.subr.mxu0 0.0
      %531 = vmatpush1.msra.mxu0 0.0
      %532 = vmatprep.subr.mxu0 0.0
      %533 = vmatpush1.msra.mxu0 0.0
      %534 = vmatprep.subr.mxu0 0.0
      %535 = vmatpush1.msra.mxu0 0.0
      %536 = vmatprep.subr.mxu0 0.0
      %537 = vmatpush1.msra.mxu0 0.0
      %538 = vmatprep.subr.mxu0 0.0
      %539 = vmatpush1.msra.mxu0 0.0
      %540 = vmatprep.subr.mxu0 0.0
      %541 = vmatpush1.msra.mxu0 0.0
      %542 = vmatprep.subr.mxu0 0.0
      %543 = vmatpush1.msra.mxu0 0.0
      %544 = vmatprep.subr.mxu0 0.0
      %545 = vmatpush1.msra.mxu0 0.0
      %546 = vmatprep.subr.mxu0 0.0
      %547 = vmatpush1.msra.mxu0 0.0
      %548 = vmatprep.subr.mxu0 0.0
      %549 = vmatpush1.msra.mxu0 0.0
      %550 = vmatprep.subr.mxu0 0.0
      %551 = vmatpush1.msra.mxu0 0.0
      %552 = vmatprep.subr.mxu0 0.0
      %553 = vmatpush1.msra.mxu0 0.0
      %554 = vmatprep.subr.mxu0 0.0
      %555 = vmatpush1.msra.mxu0 0.0
      %556 = vmatprep.subr.mxu0 0.0
      %557 = vmatpush1.msra.mxu0 0.0
      %558 = vmatprep.subr.mxu0 0.0
      %559 = vmatpush1.msra.mxu0 0.0
      %560 = vmatprep.subr.mxu0 0.0
      %561 = vmatpush1.msra.mxu0 0.0
      %562 = vmatprep.subr.mxu0 0.0
      %563 = vmatpush1.msra.mxu0 0.0
      %564 = vmatprep.subr.mxu0 0.0
      %565 = vmatpush1.msra.mxu0 0.0
      %566 = vmatprep.subr.mxu0 0.0
      %567 = vmatpush1.msra.mxu0 0.0
      %568 = vmatprep.subr.mxu0 0.0
      %569 = vmatpush1.msra.mxu0 0.0
      %570 = vmatprep.subr.mxu0 0.0
      %571 = vmatpush1.msra.mxu0 0.0
      %572 = vmatprep.mubr.f32.mxu0 0.0
      %573 = vmatmul.mubr.f32.gmra.mrb[0].mxu0 %v497
      %v574 = vpop.f32.mrb[0].mxu0
      %v575 = vadd.f32 %v478, %v574
      %v576 = vpop.f32.mrb[0].mxu0
      %577 = vmatprep.mubr.f32.mxu0 0.0
      %578 = vmatmul.mubr.f32.gmra.mrb[0].mxu0 %v500
      %v579 = vpop.f32.mrb[0].mxu0
      %v580 = vadd.f32 %v483, %v579
      %v581 = vpop.f32.mrb[0].mxu0
      %582 = vmatprep.mubr.f32.mxu0 0.0
      %583 = vmatmul.mubr.f32.gmra.mrb[0].mxu0 %v503
      %v584 = vpop.f32.mrb[0].mxu0
      %v585 = vadd.f32 %v488, %v584
      %v586 = vpop.f32.mrb[0].mxu0
      %587 = vmatprep.mubr.f32.mxu0 0.0
      %588 = vmatmul.mubr.f32.gmra.mrb[0].mxu0 %v506
      %v589 = vpop.f32.mrb[0].mxu0
      %v590 = vadd.f32 %v493, %v589
      %v591 = vpop.f32.mrb[0].mxu0
      %592 = vdwg.mxu0
      %v594 = vsel %vm398, %v293, 0
      %v597 = vsel %vm398, %v294, 0
      %v600 = vsel %vm398, %v295, 0
      %v603 = vsel %vm398, %v296, 0
      %605 = vmatprep.subr.mxu0 0.0
      %606 = vmatpush1.msra.mxu0 %v394
      %607 = vmatprep.subr.mxu0 0.0
      %608 = vmatpush1.msra.mxu0 %v395
      %609 = vmatprep.subr.mxu0 0.0
      %610 = vmatpush1.msra.mxu0 %v396
      %611 = vmatprep.subr.mxu0 0.0
      %612 = vmatpush1.msra.mxu0 %v397
      %613 = vmatprep.subr.mxu0 0.0
      %614 = vmatpush1.msra.mxu0 0.0
      %615 = vmatprep.subr.mxu0 0.0
      %616 = vmatpush1.msra.mxu0 0.0
      %617 = vmatprep.subr.mxu0 0.0
      %618 = vmatpush1.msra.mxu0 0.0
      %619 = vmatprep.subr.mxu0 0.0
      %620 = vmatpush1.msra.mxu0 0.0
      %621 = vmatprep.subr.mxu0 0.0
      %622 = vmatpush1.msra.mxu0 0.0
      %623 = vmatprep.subr.mxu0 0.0
      %624 = vmatpush1.msra.mxu0 0.0
      %625 = vmatprep.subr.mxu0 0.0
      %626 = vmatpush1.msra.mxu0 0.0
      %627 = vmatprep.subr.mxu0 0.0
      %628 = vmatpush1.msra.mxu0 0.0
      %629 = vmatprep.subr.mxu0 0.0
      %630 = vmatpush1.msra.mxu0 0.0
      %631 = vmatprep.subr.mxu0 0.0
      %632 = vmatpush1.msra.mxu0 0.0
      %633 = vmatprep.subr.mxu0 0.0
      %634 = vmatpush1.msra.mxu0 0.0
      %635 = vmatprep.subr.mxu0 0.0
      %636 = vmatpush1.msra.mxu0 0.0
      %637 = vmatprep.subr.mxu0 0.0
      %638 = vmatpush1.msra.mxu0 0.0
      %639 = vmatprep.subr.mxu0 0.0
      %640 = vmatpush1.msra.mxu0 0.0
      %641 = vmatprep.subr.mxu0 0.0
      %642 = vmatpush1.msra.mxu0 0.0
      %643 = vmatprep.subr.mxu0 0.0
      %644 = vmatpush1.msra.mxu0 0.0
      %645 = vmatprep.subr.mxu0 0.0
      %646 = vmatpush1.msra.mxu0 0.0
      %647 = vmatprep.subr.mxu0 0.0
      %648 = vmatpush1.msra.mxu0 0.0
      %649 = vmatprep.subr.mxu0 0.0
      %650 = vmatpush1.msra.mxu0 0.0
      %651 = vmatprep.subr.mxu0 0.0
      %652 = vmatpush1.msra.mxu0 0.0
      %653 = vmatprep.subr.mxu0 0.0
      %654 = vmatpush1.msra.mxu0 0.0
      %655 = vmatprep.subr.mxu0 0.0
      %656 = vmatpush1.msra.mxu0 0.0
      %657 = vmatprep.subr.mxu0 0.0
      %658 = vmatpush1.msra.mxu0 0.0
      %659 = vmatprep.subr.mxu0 0.0
      %660 = vmatpush1.msra.mxu0 0.0
      %661 = vmatprep.subr.mxu0 0.0
      %662 = vmatpush1.msra.mxu0 0.0
      %663 = vmatprep.subr.mxu0 0.0
      %664 = vmatpush1.msra.mxu0 0.0
      %665 = vmatprep.subr.mxu0 0.0
      %666 = vmatpush1.msra.mxu0 0.0
      %667 = vmatprep.subr.mxu0 0.0
      %668 = vmatpush1.msra.mxu0 0.0
      %669 = vmatprep.mubr.f32.mxu0 0.0
      %670 = vmatmul.mubr.f32.gmra.mrb[0].mxu0 %v594
      %v671 = vpop.f32.mrb[0].mxu0
      %v672 = vadd.f32 0.0, %v671
      %v673 = vpop.f32.mrb[0].mxu0
      %674 = vmatprep.mubr.f32.mxu0 0.0
      %675 = vmatmul.mubr.f32.gmra.mrb[0].mxu0 %v597
      %v676 = vpop.f32.mrb[0].mxu0
      %v677 = vadd.f32 0.0, %v676
      %v678 = vpop.f32.mrb[0].mxu0
      %679 = vmatprep.mubr.f32.mxu0 0.0
      %680 = vmatmul.mubr.f32.gmra.mrb[0].mxu0 %v600
      %v681 = vpop.f32.mrb[0].mxu0
      %v682 = vadd.f32 0.0, %v681
      %v683 = vpop.f32.mrb[0].mxu0
      %684 = vmatprep.mubr.f32.mxu0 0.0
      %685 = vmatmul.mubr.f32.gmra.mrb[0].mxu0 %v603
      %v686 = vpop.f32.mrb[0].mxu0
      %v687 = vadd.f32 0.0, %v686
      %v688 = vpop.f32.mrb[0].mxu0
      %689 = vdwg.mxu0
      %v690 = vadd.f32 %v575, %v672
      %v691 = vadd.f32 %v580, %v677
      %v692 = vadd.f32 %v585, %v682
      %v693 = vadd.f32 %v590, %v687
      %695 = vset.pattern.permute.xlu0 0
      %696 = vperm.xlu0 %695, %v311
      %v697 = vpop.permute.xlu0 %696
      %700 = vset.pattern.permute.xlu0 0
      %701 = vperm.xlu0 %700, %v312
      %v702 = vpop.permute.xlu0 %701
      %705 = vset.pattern.permute.xlu0 0
      %706 = vperm.xlu0 %705, %v313
      %v707 = vpop.permute.xlu0 %706
      %710 = vset.pattern.permute.xlu0 0
      %711 = vperm.xlu0 %710, %v314
      %v712 = vpop.permute.xlu0 %711
      %v714 = vadd.f32 %v690, %v697
      %v715 = vadd.f32 %v691, %v702
      %v716 = vadd.f32 %v692, %v707
      %v717 = vadd.f32 %v693, %v712
      %v718 = vmax.f32 %v714, 0.0
      %v719 = vmax.f32 %v715, 0.0
      %v720 = vmax.f32 %v716, 0.0
      %v721 = vmax.f32 %v717, 0.0
      %726 = vrot.lane.b32.xlu0 %v718, 113
      %v727 = vpop.permute.xlu0 %726
      %728 = vrot.lane.b32.xlu0 %v719, 113
      %v729 = vpop.permute.xlu0 %728
      %730 = vrot.lane.b32.xlu0 %v720, 113
      %v731 = vpop.permute.xlu0 %730
      %732 = vrot.lane.b32.xlu0 %v721, 113
      %v733 = vpop.permute.xlu0 %732
      %738 = vrot.lane.b32.xlu0 %v718, 1
      %v739 = vpop.permute.xlu0 %738
      %740 = vrot.lane.b32.xlu0 %v719, 1
      %v741 = vpop.permute.xlu0 %740
      %742 = vrot.lane.b32.xlu0 %v720, 1
      %v743 = vpop.permute.xlu0 %742
      %744 = vrot.lane.b32.xlu0 %v721, 1
      %v745 = vpop.permute.xlu0 %744
      %v750 = vsel %vm356, %v727, %v739
      %v751 = vsel %vm356, %v729, %v741
      %v752 = vsel %vm356, %v731, %v743
      %v753 = vsel %vm356, %v733, %v745
      %v754 = vsel %vm281, %v750, 0.0
      %v755 = vsel %vm281, %v751, 0.0
      %v756 = vsel %vm281, %v752, 0.0
      %v757 = vsel %vm281, %v753, 0.0
      %758 = vrot.lane.b32.xlu0 %v718, 127
      %v759 = vpop.permute.xlu0 %758
      %760 = vrot.lane.b32.xlu0 %v719, 127
      %v761 = vpop.permute.xlu0 %760
      %762 = vrot.lane.b32.xlu0 %v720, 127
      %v763 = vpop.permute.xlu0 %762
      %764 = vrot.lane.b32.xlu0 %v721, 127
      %v765 = vpop.permute.xlu0 %764
      %770 = vrot.lane.b32.xlu0 %v718, 15
      %v771 = vpop.permute.xlu0 %770
      %772 = vrot.lane.b32.xlu0 %v719, 15
      %v773 = vpop.permute.xlu0 %772
      %774 = vrot.lane.b32.xlu0 %v720, 15
      %v775 = vpop.permute.xlu0 %774
      %776 = vrot.lane.b32.xlu0 %v721, 15
      %v777 = vpop.permute.xlu0 %776
      %v782 = vsel %vm389, %v759, %v771
      %v783 = vsel %vm389, %v761, %v773
      %v784 = vsel %vm389, %v763, %v775
      %v785 = vsel %vm389, %v765, %v777
      %v786 = vsel %vm282, %v782, 0.0
      %v787 = vsel %vm282, %v783, 0.0
      %v788 = vsel %vm282, %v784, 0.0
      %v789 = vsel %vm282, %v785, 0.0
      %v791 = vsel %vm398, %v302, 0
      %v794 = vsel %vm398, %v303, 0
      %v797 = vsel %vm398, %v304, 0
      %v800 = vsel %vm398, %v305, 0
      %802 = vmatprep.subr.mxu0 0.0
      %803 = vmatpush1.msra.mxu0 %v718
      %804 = vmatprep.subr.mxu0 0.0
      %805 = vmatpush1.msra.mxu0 %v719
      %806 = vmatprep.subr.mxu0 0.0
      %807 = vmatpush1.msra.mxu0 %v720
      %808 = vmatprep.subr.mxu0 0.0
      %809 = vmatpush1.msra.mxu0 %v721
      %810 = vmatprep.subr.mxu0 0.0
      %811 = vmatpush1.msra.mxu0 0.0
      %812 = vmatprep.subr.mxu0 0.0
      %813 = vmatpush1.msra.mxu0 0.0
      %814 = vmatprep.subr.mxu0 0.0
      %815 = vmatpush1.msra.mxu0 0.0
      %816 = vmatprep.subr.mxu0 0.0
      %817 = vmatpush1.msra.mxu0 0.0
      %818 = vmatprep.subr.mxu0 0.0
      %819 = vmatpush1.msra.mxu0 0.0
      %820 = vmatprep.subr.mxu0 0.0
      %821 = vmatpush1.msra.mxu0 0.0
      %822 = vmatprep.subr.mxu0 0.0
      %823 = vmatpush1.msra.mxu0 0.0
      %824 = vmatprep.subr.mxu0 0.0
      %825 = vmatpush1.msra.mxu0 0.0
      %826 = vmatprep.subr.mxu0 0.0
      %827 = vmatpush1.msra.mxu0 0.0
      %828 = vmatprep.subr.mxu0 0.0
      %829 = vmatpush1.msra.mxu0 0.0
      %830 = vmatprep.subr.mxu0 0.0
      %831 = vmatpush1.msra.mxu0 0.0
      %832 = vmatprep.subr.mxu0 0.0
      %833 = vmatpush1.msra.mxu0 0.0
      %834 = vmatprep.subr.mxu0 0.0
      %835 = vmatpush1.msra.mxu0 0.0
      %836 = vmatprep.subr.mxu0 0.0
      %837 = vmatpush1.msra.mxu0 0.0
      %838 = vmatprep.subr.mxu0 0.0
      %839 = vmatpush1.msra.mxu0 0.0
      %840 = vmatprep.subr.mxu0 0.0
      %841 = vmatpush1.msra.mxu0 0.0
      %842 = vmatprep.subr.mxu0 0.0
      %843 = vmatpush1.msra.mxu0 0.0
      %844 = vmatprep.subr.mxu0 0.0
      %845 = vmatpush1.msra.mxu0 0.0
      %846 = vmatprep.subr.mxu0 0.0
      %847 = vmatpush1.msra.mxu0 0.0
      %848 = vmatprep.subr.mxu0 0.0
      %849 = vmatpush1.msra.mxu0 0.0
      %850 = vmatprep.subr.mxu0 0.0
      %851 = vmatpush1.msra.mxu0 0.0
      %852 = vmatprep.subr.mxu0 0.0
      %853 = vmatpush1.msra.mxu0 0.0
      %854 = vmatprep.subr.mxu0 0.0
      %855 = vmatpush1.msra.mxu0 0.0
      %856 = vmatprep.subr.mxu0 0.0
      %857 = vmatpush1.msra.mxu0 0.0
      %858 = vmatprep.subr.mxu0 0.0
      %859 = vmatpush1.msra.mxu0 0.0
      %860 = vmatprep.subr.mxu0 0.0
      %861 = vmatpush1.msra.mxu0 0.0
      %862 = vmatprep.subr.mxu0 0.0
      %863 = vmatpush1.msra.mxu0 0.0
      %864 = vmatprep.subr.mxu0 0.0
      %865 = vmatpush1.msra.mxu0 0.0
      %866 = vmatprep.mubr.f32.mxu0 0.0
      %867 = vmatmul.mubr.f32.gmra.mrb[0].mxu0 %v791
      %v868 = vpop.f32.mrb[0].mxu0
      %v869 = vadd.f32 0.0, %v868
      %v870 = vpop.f32.mrb[0].mxu0
      %871 = vmatprep.mubr.f32.mxu0 0.0
      %872 = vmatmul.mubr.f32.gmra.mrb[0].mxu0 %v794
      %v873 = vpop.f32.mrb[0].mxu0
      %v874 = vadd.f32 0.0, %v873
      %v875 = vpop.f32.mrb[0].mxu0
      %876 = vmatprep.mubr.f32.mxu0 0.0
      %877 = vmatmul.mubr.f32.gmra.mrb[0].mxu0 %v797
      %v878 = vpop.f32.mrb[0].mxu0
      %v879 = vadd.f32 0.0, %v878
      %v880 = vpop.f32.mrb[0].mxu0
      %881 = vmatprep.mubr.f32.mxu0 0.0
      %882 = vmatmul.mubr.f32.gmra.mrb[0].mxu0 %v800
      %v883 = vpop.f32.mrb[0].mxu0
      %v884 = vadd.f32 0.0, %v883
      %v885 = vpop.f32.mrb[0].mxu0
      %886 = vdwg.mxu0
      %v888 = vsel %vm398, %v297, 0
      %v891 = vsel %vm398, %v298, 0
      %v894 = vsel %vm398, %v299, 0
      %v897 = vsel %vm398, %v300, 0
      %899 = vmatprep.subr.mxu0 0.0
      %900 = vmatpush1.msra.mxu0 %v754
      %901 = vmatprep.subr.mxu0 0.0
      %902 = vmatpush1.msra.mxu0 %v755
      %903 = vmatprep.subr.mxu0 0.0
      %904 = vmatpush1.msra.mxu0 %v756
      %905 = vmatprep.subr.mxu0 0.0
      %906 = vmatpush1.msra.mxu0 %v757
      %907 = vmatprep.subr.mxu0 0.0
      %908 = vmatpush1.msra.mxu0 0.0
      %909 = vmatprep.subr.mxu0 0.0
      %910 = vmatpush1.msra.mxu0 0.0
      %911 = vmatprep.subr.mxu0 0.0
      %912 = vmatpush1.msra.mxu0 0.0
      %913 = vmatprep.subr.mxu0 0.0
      %914 = vmatpush1.msra.mxu0 0.0
      %915 = vmatprep.subr.mxu0 0.0
      %916 = vmatpush1.msra.mxu0 0.0
      %917 = vmatprep.subr.mxu0 0.0
      %918 = vmatpush1.msra.mxu0 0.0
      %919 = vmatprep.subr.mxu0 0.0
      %920 = vmatpush1.msra.mxu0 0.0
      %921 = vmatprep.subr.mxu0 0.0
      %922 = vmatpush1.msra.mxu0 0.0
      %923 = vmatprep.subr.mxu0 0.0
      %924 = vmatpush1.msra.mxu0 0.0
      %925 = vmatprep.subr.mxu0 0.0
      %926 = vmatpush1.msra.mxu0 0.0
      %927 = vmatprep.subr.mxu0 0.0
      %928 = vmatpush1.msra.mxu0 0.0
      %929 = vmatprep.subr.mxu0 0.0
      %930 = vmatpush1.msra.mxu0 0.0
      %931 = vmatprep.subr.mxu0 0.0
      %932 = vmatpush1.msra.mxu0 0.0
      %933 = vmatprep.subr.mxu0 0.0
      %934 = vmatpush1.msra.mxu0 0.0
      %935 = vmatprep.subr.mxu0 0.0
      %936 = vmatpush1.msra.mxu0 0.0
      %937 = vmatprep.subr.mxu0 0.0
      %938 = vmatpush1.msra.mxu0 0.0
      %939 = vmatprep.subr.mxu0 0.0
      %940 = vmatpush1.msra.mxu0 0.0
      %941 = vmatprep.subr.mxu0 0.0
      %942 = vmatpush1.msra.mxu0 0.0
      %943 = vmatprep.subr.mxu0 0.0
      %944 = vmatpush1.msra.mxu0 0.0
      %945 = vmatprep.subr.mxu0 0.0
      %946 = vmatpush1.msra.mxu0 0.0
      %947 = vmatprep.subr.mxu0 0.0
      %948 = vmatpush1.msra.mxu0 0.0
      %949 = vmatprep.subr.mxu0 0.0
      %950 = vmatpush1.msra.mxu0 0.0
      %951 = vmatprep.subr.mxu0 0.0
      %952 = vmatpush1.msra.mxu0 0.0
      %953 = vmatprep.subr.mxu0 0.0
      %954 = vmatpush1.msra.mxu0 0.0
      %955 = vmatprep.subr.mxu0 0.0
      %956 = vmatpush1.msra.mxu0 0.0
      %957 = vmatprep.subr.mxu0 0.0
      %958 = vmatpush1.msra.mxu0 0.0
      %959 = vmatprep.subr.mxu0 0.0
      %960 = vmatpush1.msra.mxu0 0.0
      %961 = vmatprep.subr.mxu0 0.0
      %962 = vmatpush1.msra.mxu0 0.0
      %963 = vmatprep.mubr.f32.mxu0 0.0
      %964 = vmatmul.mubr.f32.gmra.mrb[0].mxu0 %v888
      %v965 = vpop.f32.mrb[0].mxu0
      %v966 = vadd.f32 %v869, %v965
      %v967 = vpop.f32.mrb[0].mxu0
      %968 = vmatprep.mubr.f32.mxu0 0.0
      %969 = vmatmul.mubr.f32.gmra.mrb[0].mxu0 %v891
      %v970 = vpop.f32.mrb[0].mxu0
      %v971 = vadd.f32 %v874, %v970
      %v972 = vpop.f32.mrb[0].mxu0
      %973 = vmatprep.mubr.f32.mxu0 0.0
      %974 = vmatmul.mubr.f32.gmra.mrb[0].mxu0 %v894
      %v975 = vpop.f32.mrb[0].mxu0
      %v976 = vadd.f32 %v879, %v975
      %v977 = vpop.f32.mrb[0].mxu0
      %978 = vmatprep.mubr.f32.mxu0 0.0
      %979 = vmatmul.mubr.f32.gmra.mrb[0].mxu0 %v897
      %v980 = vpop.f32.mrb[0].mxu0
      %v981 = vadd.f32 %v884, %v980
      %v982 = vpop.f32.mrb[0].mxu0
      %983 = vdwg.mxu0
      %v985 = vsel %vm398, %v307, 0
      %v988 = vsel %vm398, %v308, 0
      %v991 = vsel %vm398, %v309, 0
      %v994 = vsel %vm398, %v310, 0
      %996 = vmatprep.subr.mxu0 0.0
      %997 = vmatpush1.msra.mxu0 %v786
      %998 = vmatprep.subr.mxu0 0.0
      %999 = vmatpush1.msra.mxu0 %v787
      %1000 = vmatprep.subr.mxu0 0.0
      %1001 = vmatpush1.msra.mxu0 %v788
      %1002 = vmatprep.subr.mxu0 0.0
      %1003 = vmatpush1.msra.mxu0 %v789
      %1004 = vmatprep.subr.mxu0 0.0
      %1005 = vmatpush1.msra.mxu0 0.0
      %1006 = vmatprep.subr.mxu0 0.0
      %1007 = vmatpush1.msra.mxu0 0.0
      %1008 = vmatprep.subr.mxu0 0.0
      %1009 = vmatpush1.msra.mxu0 0.0
      %1010 = vmatprep.subr.mxu0 0.0
      %1011 = vmatpush1.msra.mxu0 0.0
      %1012 = vmatprep.subr.mxu0 0.0
      %1013 = vmatpush1.msra.mxu0 0.0
      %1014 = vmatprep.subr.mxu0 0.0
      %1015 = vmatpush1.msra.mxu0 0.0
      %1016 = vmatprep.subr.mxu0 0.0
      %1017 = vmatpush1.msra.mxu0 0.0
      %1018 = vmatprep.subr.mxu0 0.0
      %1019 = vmatpush1.msra.mxu0 0.0
      %1020 = vmatprep.subr.mxu0 0.0
      %1021 = vmatpush1.msra.mxu0 0.0
      %1022 = vmatprep.subr.mxu0 0.0
      %1023 = vmatpush1.msra.mxu0 0.0
      %1024 = vmatprep.subr.mxu0 0.0
      %1025 = vmatpush1.msra.mxu0 0.0
      %1026 = vmatprep.subr.mxu0 0.0
      %1027 = vmatpush1.msra.mxu0 0.0
      %1028 = vmatprep.subr.mxu0 0.0
      %1029 = vmatpush1.msra.mxu0 0.0
      %1030 = vmatprep.subr.mxu0 0.0
      %1031 = vmatpush1.msra.mxu0 0.0
      %1032 = vmatprep.subr.mxu0 0.0
      %1033 = vmatpush1.msra.mxu0 0.0
      %1034 = vmatprep.subr.mxu0 0.0
      %1035 = vmatpush1.msra.mxu0 0.0
      %1036 = vmatprep.subr.mxu0 0.0
      %1037 = vmatpush1.msra.mxu0 0.0
      %1038 = vmatprep.subr.mxu0 0.0
      %1039 = vmatpush1.msra.mxu0 0.0
      %1040 = vmatprep.subr.mxu0 0.0
      %1041 = vmatpush1.msra.mxu0 0.0
      %1042 = vmatprep.subr.mxu0 0.0
      %1043 = vmatpush1.msra.mxu0 0.0
      %1044 = vmatprep.subr.mxu0 0.0
      %1045 = vmatpush1.msra.mxu0 0.0
      %1046 = vmatprep.subr.mxu0 0.0
      %1047 = vmatpush1.msra.mxu0 0.0
      %1048 = vmatprep.subr.mxu0 0.0
      %1049 = vmatpush1.msra.mxu0 0.0
      %1050 = vmatprep.subr.mxu0 0.0
      %1051 = vmatpush1.msra.mxu0 0.0
      %1052 = vmatprep.subr.mxu0 0.0
      %1053 = vmatpush1.msra.mxu0 0.0
      %1054 = vmatprep.subr.mxu0 0.0
      %1055 = vmatpush1.msra.mxu0 0.0
      %1056 = vmatprep.subr.mxu0 0.0
      %1057 = vmatpush1.msra.mxu0 0.0
      %1058 = vmatprep.subr.mxu0 0.0
      %1059 = vmatpush1.msra.mxu0 0.0
      %1060 = vmatprep.mubr.f32.mxu0 0.0
      %1061 = vmatmul.mubr.f32.gmra.mrb[0].mxu0 %v985
      %v1062 = vpop.f32.mrb[0].mxu0
      %v1063 = vadd.f32 0.0, %v1062
      %v1064 = vpop.f32.mrb[0].mxu0
      %1065 = vmatprep.mubr.f32.mxu0 0.0
      %1066 = vmatmul.mubr.f32.gmra.mrb[0].mxu0 %v988
      %v1067 = vpop.f32.mrb[0].mxu0
      %v1068 = vadd.f32 0.0, %v1067
      %v1069 = vpop.f32.mrb[0].mxu0
      %1070 = vmatprep.mubr.f32.mxu0 0.0
      %1071 = vmatmul.mubr.f32.gmra.mrb[0].mxu0 %v991
      %v1072 = vpop.f32.mrb[0].mxu0
      %v1073 = vadd.f32 0.0, %v1072
      %v1074 = vpop.f32.mrb[0].mxu0
      %1075 = vmatprep.mubr.f32.mxu0 0.0
      %1076 = vmatmul.mubr.f32.gmra.mrb[0].mxu0 %v994
      %v1077 = vpop.f32.mrb[0].mxu0
      %v1078 = vadd.f32 0.0, %v1077
      %v1079 = vpop.f32.mrb[0].mxu0
      %1080 = vdwg.mxu0
      %v1081 = vadd.f32 %v966, %v1063
      %v1082 = vadd.f32 %v971, %v1068
      %v1083 = vadd.f32 %v976, %v1073
      %v1084 = vadd.f32 %v981, %v1078
      %1086 = vset.pattern.permute.xlu0 0
      %1087 = vperm.xlu0 %1086, %v315
      %v1088 = vpop.permute.xlu0 %1087
      %1091 = vset.pattern.permute.xlu0 0
      %1092 = vperm.xlu0 %1091, %v316
      %v1093 = vpop.permute.xlu0 %1092
      %1096 = vset.pattern.permute.xlu0 0
      %1097 = vperm.xlu0 %1096, %v317
      %v1098 = vpop.permute.xlu0 %1097
      %1101 = vset.pattern.permute.xlu0 0
      %1102 = vperm.xlu0 %1101, %v318
      %v1103 = vpop.permute.xlu0 %1102
      %v1105 = vadd.f32 %v1081, %v1088
      %v1106 = vadd.f32 %v1082, %v1093
      %v1107 = vadd.f32 %v1083, %v1098
      %v1108 = vadd.f32 %v1084, %v1103
      %vm1109 = vcmask 130048
      %v1110 = vsel %vm1109, %v1105, 0.0
      %1111 = vadd.xlane.f32.xlu0 %v1110
      %v1112 = vpop.xlane.xlu0 %1111
      %v1113 = vsel %vm1109, %v1106, 0.0
      %1114 = vadd.xlane.f32.xlu0 %v1113
      %v1115 = vpop.xlane.xlu0 %1114
      %v1116 = vsel %vm1109, %v1107, 0.0
      %1117 = vadd.xlane.f32.xlu0 %v1116
      %v1118 = vpop.xlane.xlu0 %1117
      %v1119 = vsel %vm1109, %v1108, 0.0
      %1120 = vadd.xlane.f32.xlu0 %v1119
      %v1121 = vpop.xlane.xlu0 %1120
      %v1122 = vrcp.pop 16.0
      %v1123 = vmul.f32 %v1112, %v1122
      %v1124 = vmul.f32 %v1115, %v1122
      %v1125 = vmul.f32 %v1118, %v1122
      %v1126 = vmul.f32 %v1121, %v1122
      %v1128 = vsel %vm398, %v319, 0
      %1130 = vmatprep.subr.mxu0 0.0
      %1131 = vmatpush1.msra.mxu0 %v1123
      %1132 = vmatprep.subr.mxu0 0.0
      %1133 = vmatpush1.msra.mxu0 %v1124
      %1134 = vmatprep.subr.mxu0 0.0
      %1135 = vmatpush1.msra.mxu0 %v1125
      %1136 = vmatprep.subr.mxu0 0.0
      %1137 = vmatpush1.msra.mxu0 %v1126
      %1138 = vmatprep.subr.mxu0 0.0
      %1139 = vmatpush1.msra.mxu0 0.0
      %1140 = vmatprep.subr.mxu0 0.0
      %1141 = vmatpush1.msra.mxu0 0.0
      %1142 = vmatprep.subr.mxu0 0.0
      %1143 = vmatpush1.msra.mxu0 0.0
      %1144 = vmatprep.subr.mxu0 0.0
      %1145 = vmatpush1.msra.mxu0 0.0
      %1146 = vmatprep.subr.mxu0 0.0
      %1147 = vmatpush1.msra.mxu0 0.0
      %1148 = vmatprep.subr.mxu0 0.0
      %1149 = vmatpush1.msra.mxu0 0.0
      %1150 = vmatprep.subr.mxu0 0.0
      %1151 = vmatpush1.msra.mxu0 0.0
      %1152 = vmatprep.subr.mxu0 0.0
      %1153 = vmatpush1.msra.mxu0 0.0
      %1154 = vmatprep.subr.mxu0 0.0
      %1155 = vmatpush1.msra.mxu0 0.0
      %1156 = vmatprep.subr.mxu0 0.0
      %1157 = vmatpush1.msra.mxu0 0.0
      %1158 = vmatprep.subr.mxu0 0.0
      %1159 = vmatpush1.msra.mxu0 0.0
      %1160 = vmatprep.subr.mxu0 0.0
      %1161 = vmatpush1.msra.mxu0 0.0
      %1162 = vmatprep.subr.mxu0 0.0
      %1163 = vmatpush1.msra.mxu0 0.0
      %1164 = vmatprep.subr.mxu0 0.0
      %1165 = vmatpush1.msra.mxu0 0.0
      %1166 = vmatprep.subr.mxu0 0.0
      %1167 = vmatpush1.msra.mxu0 0.0
      %1168 = vmatprep.subr.mxu0 0.0
      %1169 = vmatpush1.msra.mxu0 0.0
      %1170 = vmatprep.subr.mxu0 0.0
      %1171 = vmatpush1.msra.mxu0 0.0
      %1172 = vmatprep.subr.mxu0 0.0
      %1173 = vmatpush1.msra.mxu0 0.0
      %1174 = vmatprep.subr.mxu0 0.0
      %1175 = vmatpush1.msra.mxu0 0.0
      %1176 = vmatprep.subr.mxu0 0.0
      %1177 = vmatpush1.msra.mxu0 0.0
      %1178 = vmatprep.subr.mxu0 0.0
      %1179 = vmatpush1.msra.mxu0 0.0
      %1180 = vmatprep.subr.mxu0 0.0
      %1181 = vmatpush1.msra.mxu0 0.0
      %1182 = vmatprep.subr.mxu0 0.0
      %1183 = vmatpush1.msra.mxu0 0.0
      %1184 = vmatprep.subr.mxu0 0.0
      %1185 = vmatpush1.msra.mxu0 0.0
      %1186 = vmatprep.subr.mxu0 0.0
      %1187 = vmatpush1.msra.mxu0 0.0
      %1188 = vmatprep.subr.mxu0 0.0
      %1189 = vmatpush1.msra.mxu0 0.0
      %1190 = vmatprep.subr.mxu0 0.0
      %1191 = vmatpush1.msra.mxu0 0.0
      %1192 = vmatprep.subr.mxu0 0.0
      %1193 = vmatpush1.msra.mxu0 0.0
      %1194 = vmatprep.mubr.f32.mxu0 0.0
      %1195 = vmatmul.mubr.f32.gmra.mrb[0].mxu0 %v1128
      %v1196 = vpop.f32.mrb[0].mxu0
      %v1197 = vadd.f32 0.0, %v1196
      %v1198 = vpop.f32.mrb[0].mxu0
      %1199 = vdwg.mxu0
      %v1200 = vmax.f32 %v1197, 0.0
      %vm1201 = vcmask 64512
      %v1203 = vsel %vm1201, %v320, 0
      %v1206 = vsel %vm1201, %v321, 0
      %v1209 = vsel %vm1201, %v322, 0
      %v1212 = vsel %vm1201, %v323, 0
      %1214 = vmatprep.subr.mxu0 0.0
      %1215 = vmatpush1.msra.mxu0 %v1200
      %1216 = vmatprep.subr.mxu0 0.0
      %1217 = vmatpush1.msra.mxu0 0.0
      %1218 = vmatprep.subr.mxu0 0.0
      %1219 = vmatpush1.msra.mxu0 0.0
      %1220 = vmatprep.subr.mxu0 0.0
      %1221 = vmatpush1.msra.mxu0 0.0
      %1222 = vmatprep.subr.mxu0 0.0
      %1223 = vmatpush1.msra.mxu0 0.0
      %1224 = vmatprep.subr.mxu0 0.0
      %1225 = vmatpush1.msra.mxu0 0.0
      %1226 = vmatprep.subr.mxu0 0.0
      %1227 = vmatpush1.msra.mxu0 0.0
      %1228 = vmatprep.subr.mxu0 0.0
      %1229 = vmatpush1.msra.mxu0 0.0
      %1230 = vmatprep.subr.mxu0 0.0
      %1231 = vmatpush1.msra.mxu0 0.0
      %1232 = vmatprep.subr.mxu0 0.0
      %1233 = vmatpush1.msra.mxu0 0.0
      %1234 = vmatprep.subr.mxu0 0.0
      %1235 = vmatpush1.msra.mxu0 0.0
      %1236 = vmatprep.subr.mxu0 0.0
      %1237 = vmatpush1.msra.mxu0 0.0
      %1238 = vmatprep.subr.mxu0 0.0
      %1239 = vmatpush1.msra.mxu0 0.0
      %1240 = vmatprep.subr.mxu0 0.0
      %1241 = vmatpush1.msra.mxu0 0.0
      %1242 = vmatprep.subr.mxu0 0.0
      %1243 = vmatpush1.msra.mxu0 0.0
      %1244 = vmatprep.subr.mxu0 0.0
      %1245 = vmatpush1.msra.mxu0 0.0
      %1246 = vmatprep.subr.mxu0 0.0
      %1247 = vmatpush1.msra.mxu0 0.0
      %1248 = vmatprep.subr.mxu0 0.0
      %1249 = vmatpush1.msra.mxu0 0.0
      %1250 = vmatprep.subr.mxu0 0.0
      %1251 = vmatpush1.msra.mxu0 0.0
      %1252 = vmatprep.subr.mxu0 0.0
      %1253 = vmatpush1.msra.mxu0 0.0
      %1254 = vmatprep.subr.mxu0 0.0
      %1255 = vmatpush1.msra.mxu0 0.0
      %1256 = vmatprep.subr.mxu0 0.0
      %1257 = vmatpush1.msra.mxu0 0.0
      %1258 = vmatprep.subr.mxu0 0.0
      %1259 = vmatpush1.msra.mxu0 0.0
      %1260 = vmatprep.subr.mxu0 0.0
      %1261 = vmatpush1.msra.mxu0 0.0
      %1262 = vmatprep.subr.mxu0 0.0
      %1263 = vmatpush1.msra.mxu0 0.0
      %1264 = vmatprep.subr.mxu0 0.0
      %1265 = vmatpush1.msra.mxu0 0.0
      %1266 = vmatprep.subr.mxu0 0.0
      %1267 = vmatpush1.msra.mxu0 0.0
      %1268 = vmatprep.subr.mxu0 0.0
      %1269 = vmatpush1.msra.mxu0 0.0
      %1270 = vmatprep.subr.mxu0 0.0
      %1271 = vmatpush1.msra.mxu0 0.0
      %1272 = vmatprep.subr.mxu0 0.0
      %1273 = vmatpush1.msra.mxu0 0.0
      %1274 = vmatprep.subr.mxu0 0.0
      %1275 = vmatpush1.msra.mxu0 0.0
      %1276 = vmatprep.subr.mxu0 0.0
      %1277 = vmatpush1.msra.mxu0 0.0
      %1278 = vmatprep.mubr.f32.mxu0 0.0
      %1279 = vmatmul.mubr.f32.gmra.mrb[0].mxu0 %v1203
      %v1280 = vpop.f32.mrb[0].mxu0
      %v1281 = vadd.f32 0.0, %v1280
      %v1282 = vpop.f32.mrb[0].mxu0
      %1283 = vmatprep.mubr.f32.mxu0 0.0
      %1284 = vmatmul.mubr.f32.gmra.mrb[0].mxu0 %v1206
      %v1285 = vpop.f32.mrb[0].mxu0
      %v1286 = vadd.f32 0.0, %v1285
      %v1287 = vpop.f32.mrb[0].mxu0
      %1288 = vmatprep.mubr.f32.mxu0 0.0
      %1289 = vmatmul.mubr.f32.gmra.mrb[0].mxu0 %v1209
      %v1290 = vpop.f32.mrb[0].mxu0
      %v1291 = vadd.f32 0.0, %v1290
      %v1292 = vpop.f32.mrb[0].mxu0
      %1293 = vmatprep.mubr.f32.mxu0 0.0
      %1294 = vmatmul.mubr.f32.gmra.mrb[0].mxu0 %v1212
      %v1295 = vpop.f32.mrb[0].mxu0
      %v1296 = vadd.f32 0.0, %v1295
      %v1297 = vpop.f32.mrb[0].mxu0
      %1298 = vdwg.mxu0
      %v1299 = vxor.u32 %v1281, 2147483648
      %v1300 = vxor.u32 %v1286, 2147483648
      %v1301 = vxor.u32 %v1291, 2147483648
      %v1302 = vxor.u32 %v1296, 2147483648
      %v1303 = vmul.f32 %v1299, 1.442695
      %v1304 = vpow.pop %v1303
      %v1305 = vmul.f32 %v1300, 1.442695
      %v1306 = vpow.pop %v1305
      %v1307 = vmul.f32 %v1301, 1.442695
      %v1308 = vpow.pop %v1307
      %v1309 = vmul.f32 %v1302, 1.442695
      %v1310 = vpow.pop %v1309
      %v1311 = vadd.f32 %v1304, 1.0
      %v1312 = vadd.f32 %v1306, 1.0
      %v1313 = vadd.f32 %v1308, 1.0
      %v1314 = vadd.f32 %v1310, 1.0
      %v1315 = vrcp.pop %v1311
      %v1316 = vmul.f32 1.0, %v1315
      %v1317 = vrcp.pop %v1312
      %v1318 = vmul.f32 1.0, %v1317
      %v1319 = vrcp.pop %v1313
      %v1320 = vmul.f32 1.0, %v1319
      %v1321 = vrcp.pop %v1314
      %v1322 = vmul.f32 1.0, %v1321
      %1324 = vset.pattern.permute.xlu0 0
      %1325 = vperm.xlu0 %1324, %v1316
      %v1326 = vpop.permute.xlu0 %1325
      %1329 = vset.pattern.permute.xlu0 0
      %1330 = vperm.xlu0 %1329, %v1318
      %v1331 = vpop.permute.xlu0 %1330
      %1334 = vset.pattern.permute.xlu0 0
      %1335 = vperm.xlu0 %1334, %v1320
      %v1336 = vpop.permute.xlu0 %1335
      %1339 = vset.pattern.permute.xlu0 0
      %1340 = vperm.xlu0 %1339, %v1322
      %v1341 = vpop.permute.xlu0 %1340
      %v1343 = vmul.f32 %v1105, %v1326
      %v1344 = vmul.f32 %v1106, %v1331
      %v1345 = vmul.f32 %v1107, %v1336
      %v1346 = vmul.f32 %v1108, %v1341
      %v1347 = vadd.f32 %v1343, %v324
      %v1348 = vadd.f32 %v1344, %v325
      %v1349 = vadd.f32 %v1345, %v326
      %v1350 = vadd.f32 %v1346, %v327
      %v1351 = vmax.f32 %v1347, 0.0
      %v1352 = vmax.f32 %v1348, 0.0
      %v1353 = vmax.f32 %v1349, 0.0
      %v1354 = vmax.f32 %v1350, 0.0
      %1355 = vst.msk [vmem:[%s278] sm:$0xff] %vm1109, %v1351
      %1356 = vst.msk [vmem:[%s278 + $0x8] sm:$0xff] %vm1109, %v1352
      %1357 = vst.msk [vmem:[%s278 + $0x10] sm:$0xff] %vm1109, %v1353
      %1358 = vst.msk [vmem:[%s278 + $0x18] sm:$0xff] %vm1109, %v1354
      %p1359 = scmp.lt.s32.totalorder %s18, 1
      %s1360 = scalar_select %p1359, %s18, 1
      %s1361 = smul.addr %s1360, 4
      %s1362 = smul.addr %s1361, 8
      %s1363 = scalar_lea.vmem %s7, %s1362
      // Predicated region
      $region49: #{tpu_custom_call.1} parent=47 // pred_check
        %p1364 = pneg %p188
      $region50: #{tpu_custom_call.1} parent=47 // pred_check_branch
        %1366 = sbr.rel (%p1364) target = $region52
      $region51: #{tpu_custom_call.1} parent=47 // pred_region
        _
      $region52: #{tpu_custom_call.1} parent=47 // pred_fallthru
        _
    $region48: #{tpu_custom_call.1} parent=5 // pred_fallthru
      _
    %p1367 = scmp.le.s32.totalorder 2, %s13
    // Predicated region
    $region53: #{tpu_custom_call.1} parent=5 // pred_check
      %p1368 = pneg %p1367
    $region54: #{tpu_custom_call.1} parent=5 // pred_check_branch
      %1370 = sbr.rel (%p1368) target = $region56
    $region55: #{tpu_custom_call.1} parent=5 // pred_region
      %s1371 = ssub.s32 %s13, 2
      // Predicated region
      $region57: #{tpu_custom_call.1} parent=55 // pred_check
        %p1372 = pneg %p194
      $region58: #{tpu_custom_call.1} parent=55 // pred_check_branch
        %1374 = sbr.rel (%p1372) target = $region60
      $region59: #{tpu_custom_call.1} parent=55 // pred_region
        %p1375 = scmp.lt.s32.totalorder %s19, 1
        %s1376 = scalar_select %p1375, %s19, 1
        %s1377 = smul.addr %s1376, 4
        %s1378 = smul.addr %s1377, 8
        %s1379 = scalar_lea.vmem %s7, %s1378
      $region60: #{tpu_custom_call.1} parent=55 // pred_fallthru
        _
    $region56: #{tpu_custom_call.1} parent=5 // pred_fallthru
      _
  $region6: #{tpu_custom_call.1} parent=0 // loop_footer
    %s17 = sadd.s32 1, %s13
  $region7: #{tpu_custom_call.1} parent=0 // loop_footer_branch
    %12 = sbr.rel target = $region3
  $region8: #{tpu_custom_call.1} parent=0 // loop_exit
    _

// kernel: tpu_custom_call.1
$region0: #{tpu_custom_call.1}
  #allocation0 [shape = 'u32[]', space=smem, size = 0x4, offset = 0x4, fixed_abs, tag = 'smem constant byte address 0x4 - core index']
  #allocation1 [shape = 'u32[144,128]{1,0:T(1,128)}', space=vmem, size = 0x12000, scoped, tag = 'internal scratch']
  %s0 = inlined_call_operand.vmem [shape: f32[2,32,16], index: 0, kind: input, shape index: {}]
  %s1 = inlined_call_operand.vmem [shape: f32[3,32,32], index: 1, kind: input, shape index: {}]
  %s2 = inlined_call_operand.vmem [shape: f32[32,1], index: 2, kind: input, shape index: {}]
  %s3 = inlined_call_operand.vmem [shape: f32[3,32,32], index: 3, kind: input, shape index: {}]
  %s4 = inlined_call_operand.vmem [shape: f32[32,1], index: 4, kind: input, shape index: {}]
  %s5 = inlined_call_operand.vmem [shape: f32[8,32], index: 5, kind: input, shape index: {}]
  %s6 = inlined_call_operand.vmem [shape: f32[32,8], index: 6, kind: input, shape index: {}]
  %s7 = inlined_call_operand.vmem [shape: f32[2,32,16], index: 7, kind: output, shape index: {}]
  %s8 = sld [smem:[#allocation0]]
  $region61: #{tpu_custom_call.1} parent=0
    _
  %s10 = ssub.s32 1, %s8
  %s11 = scalar_select 0, %s10, %s8
  loop: start=0, step=1, limit=4
  $region2: #{tpu_custom_call.1} parent=0 // loop_pre_header
    _
  $region3: #{tpu_custom_call.1} parent=0 // loop_header
    %s13 = sphi 0, %s17
    %p14 = scmp.ge.s32.totalorder %s13, 4
    %s23 = sphi 0, %s25
    %s26 = sphi 0, %s23
    %s27 = sphi 0, %s26
    %s43 = sphi 0, %s27
    %s47 = sphi 0, %s47
    %s49 = sphi 0, %s47
    %s50 = sphi 0, %s49
    %s64 = sphi 0, %s50
    %s68 = sphi 0, %s68
    %s70 = sphi 0, %s68
    %s71 = sphi 0, %s70
    %s85 = sphi 0, %s71
    %s89 = sphi 0, %s89
    %s91 = sphi 0, %s89
    %s92 = sphi 0, %s91
    %s106 = sphi 0, %s92
    %s110 = sphi 0, %s110
    %s112 = sphi 0, %s110
    %s113 = sphi 0, %s112
    %s127 = sphi 0, %s113
    %s131 = sphi 0, %s131
    %s133 = sphi 0, %s131
    %s134 = sphi 0, %s133
    %s148 = sphi 0, %s134
    %s152 = sphi 0, %s152
    %s154 = sphi 0, %s152
    %s155 = sphi 0, %s154
    %s169 = sphi 0, %s155
    %s175 = sphi 0, %s177
    %s178 = sphi 0, %s175
    %s179 = sphi 0, %s178
    %s195 = sphi 0, %s179
  $region4: #{tpu_custom_call.1} parent=0 // loop_header_branch
    %16 = sbr.rel (%p14) target = $region8
  $region5: #{tpu_custom_call.1} parent=0 // loop_body
    %s18 = ssub.s32 %s13, 1
    %s19 = ssub.s32 %s13, 2
    %s20 = sadd.s32 %s13, 1
    %s21 = ssub.s32 %s13, %s20
    %p22 = scmp.eq.s32.totalorder %s21, 0
    %s24 = sadd.s32 %s23, 1
    %s25 = scalar_select %p22, %s23, %s24
    %p28 = pneg %p22
    %p29 = scmp.eq.s32.totalorder %s13, 1
    %p30 = por %p28, %p29
    %p31 = scmp.ne.s32.totalorder %s23, %s26
    %p32 = scmp.eq.s32.totalorder %s13, 0
    %p33 = por %p31, %p32
    %p34 = scmp.ne.s32.totalorder %s23, %s26
    %p35 = scmp.eq.s32.totalorder %s18, 1
    %p36 = por %p34, %p35
    %p37 = scmp.ne.s32.totalorder %s26, %s27
    %p38 = scmp.eq.s32.totalorder %s18, 0
    %p39 = por %p37, %p38
    %p40 = scmp.ne.s32.totalorder %s26, %s27
    %p41 = scmp.eq.s32.totalorder %s19, 1
    %p42 = por %p40, %p41
    %p44 = scmp.ne.s32.totalorder %s27, %s43
    %p45 = scmp.eq.s32.totalorder %s19, 0
    %p46 = por %p44, %p45
    %s48 = sadd.s32 %s47, 1
    %p51 = scmp.eq.s32.totalorder %s13, 1
    %p52 = scmp.ne.s32.totalorder %s47, %s49
    %p53 = scmp.eq.s32.totalorder %s13, 0
    %p54 = por %p52, %p53
    %p55 = scmp.ne.s32.totalorder %s47, %s49
    %p56 = scmp.eq.s32.totalorder %s18, 1
    %p57 = por %p55, %p56
    %p58 = scmp.ne.s32.totalorder %s49, %s50
    %p59 = scmp.eq.s32.totalorder %s18, 0
    %p60 = por %p58, %p59
    %p61 = scmp.ne.s32.totalorder %s49, %s50
    %p62 = scmp.eq.s32.totalorder %s19, 1
    %p63 = por %p61, %p62
    %p65 = scmp.ne.s32.totalorder %s50, %s64
    %p66 = scmp.eq.s32.totalorder %s19, 0
    %p67 = por %p65, %p66
    %s69 = sadd.s32 %s68, 1
    %p72 = scmp.eq.s32.totalorder %s13, 1
    %p73 = scmp.ne.s32.totalorder %s68, %s70
    %p74 = scmp.eq.s32.totalorder %s13, 0
    %p75 = por %p73, %p74
    %p76 = scmp.ne.s32.totalorder %s68, %s70
    %p77 = scmp.eq.s32.totalorder %s18, 1
    %p78 = por %p76, %p77
    %p79 = scmp.ne.s32.totalorder %s70, %s71
    %p80 = scmp.eq.s32.totalorder %s18, 0
    %p81 = por %p79, %p80
    %p82 = scmp.ne.s32.totalorder %s70, %s71
    %p83 = scmp.eq.s32.totalorder %s19, 1
    %p84 = por %p82, %p83
    %p86 = scmp.ne.s32.totalorder %s71, %s85
    %p87 = scmp.eq.s32.totalorder %s19, 0
    %p88 = por %p86, %p87
    %s90 = sadd.s32 %s89, 1
    %p93 = scmp.eq.s32.totalorder %s13, 1
    %p94 = scmp.ne.s32.totalorder %s89, %s91
    %p95 = scmp.eq.s32.totalorder %s13, 0
    %p96 = por %p94, %p95
    %p97 = scmp.ne.s32.totalorder %s89, %s91
    %p98 = scmp.eq.s32.totalorder %s18, 1
    %p99 = por %p97, %p98
    %p100 = scmp.ne.s32.totalorder %s91, %s92
    %p101 = scmp.eq.s32.totalorder %s18, 0
    %p102 = por %p100, %p101
    %p103 = scmp.ne.s32.totalorder %s91, %s92
    %p104 = scmp.eq.s32.totalorder %s19, 1
    %p105 = por %p103, %p104
    %p107 = scmp.ne.s32.totalorder %s92, %s106
    %p108 = scmp.eq.s32.totalorder %s19, 0
    %p109 = por %p107, %p108
    %s111 = sadd.s32 %s110, 1
    %p114 = scmp.eq.s32.totalorder %s13, 1
    %p115 = scmp.ne.s32.totalorder %s110, %s112
    %p116 = scmp.eq.s32.totalorder %s13, 0
    %p117 = por %p115, %p116
    %p118 = scmp.ne.s32.totalorder %s110, %s112
    %p119 = scmp.eq.s32.totalorder %s18, 1
    %p120 = por %p118, %p119
    %p121 = scmp.ne.s32.totalorder %s112, %s113
    %p122 = scmp.eq.s32.totalorder %s18, 0
    %p123 = por %p121, %p122
    %p124 = scmp.ne.s32.totalorder %s112, %s113
    %p125 = scmp.eq.s32.totalorder %s19, 1
    %p126 = por %p124, %p125
    %p128 = scmp.ne.s32.totalorder %s113, %s127
    %p129 = scmp.eq.s32.totalorder %s19, 0
    %p130 = por %p128, %p129
    %s132 = sadd.s32 %s131, 1
    %p135 = scmp.eq.s32.totalorder %s13, 1
    %p136 = scmp.ne.s32.totalorder %s131, %s133
    %p137 = scmp.eq.s32.totalorder %s13, 0
    %p138 = por %p136, %p137
    %p139 = scmp.ne.s32.totalorder %s131, %s133
    %p140 = scmp.eq.s32.totalorder %s18, 1
    %p141 = por %p139, %p140
    %p142 = scmp.ne.s32.totalorder %s133, %s134
    %p143 = scmp.eq.s32.totalorder %s18, 0
    %p144 = por %p142, %p143
    %p145 = scmp.ne.s32.totalorder %s133, %s134
    %p146 = scmp.eq.s32.totalorder %s19, 1
    %p147 = por %p145, %p146
    %p149 = scmp.ne.s32.totalorder %s134, %s148
    %p150 = scmp.eq.s32.totalorder %s19, 0
    %p151 = por %p149, %p150
    %s153 = sadd.s32 %s152, 1
    %p156 = scmp.eq.s32.totalorder %s13, 1
    %p157 = scmp.ne.s32.totalorder %s152, %s154
    %p158 = scmp.eq.s32.totalorder %s13, 0
    %p159 = por %p157, %p158
    %p160 = scmp.ne.s32.totalorder %s152, %s154
    %p161 = scmp.eq.s32.totalorder %s18, 1
    %p162 = por %p160, %p161
    %p163 = scmp.ne.s32.totalorder %s154, %s155
    %p164 = scmp.eq.s32.totalorder %s18, 0
    %p165 = por %p163, %p164
    %p166 = scmp.ne.s32.totalorder %s154, %s155
    %p167 = scmp.eq.s32.totalorder %s19, 1
    %p168 = por %p166, %p167
    %p170 = scmp.ne.s32.totalorder %s155, %s169
    %p171 = scmp.eq.s32.totalorder %s19, 0
    %p172 = por %p170, %p171
    %s173 = ssub.s32 %s13, %s20
    %p174 = scmp.eq.s32.totalorder %s173, 0
    %s176 = sadd.s32 %s175, 1
    %s177 = scalar_select %p174, %s175, %s176
    %p180 = pneg %p174
    %p181 = scmp.eq.s32.totalorder %s13, 1
    %p182 = por %p180, %p181
    %p183 = scmp.ne.s32.totalorder %s175, %s178
    %p184 = scmp.eq.s32.totalorder %s13, 0
    %p185 = por %p183, %p184
    %p186 = scmp.ne.s32.totalorder %s175, %s178
    %p187 = scmp.eq.s32.totalorder %s18, 1
    %p188 = por %p186, %p187
    %p189 = scmp.ne.s32.totalorder %s178, %s179
    %p190 = scmp.eq.s32.totalorder %s18, 0
    %p191 = por %p189, %p190
    %p192 = scmp.ne.s32.totalorder %s178, %s179
    %p193 = scmp.eq.s32.totalorder %s19, 1
    %p194 = por %p192, %p193
    %p196 = scmp.ne.s32.totalorder %s179, %s195
    %p197 = scmp.eq.s32.totalorder %s19, 0
    %p198 = por %p196, %p197
    %p199 = scmp.le.s32.totalorder 1, %s13
    %p200 = scmp.lt.s32.totalorder %s13, 3
    %p201 = pnand %p199, %p200
    %p202 = pneg %p201
    // Predicated region
    $region9: #{tpu_custom_call.1} parent=5 // pred_check
      _
    $region10: #{tpu_custom_call.1} parent=5 // pred_check_branch
      %204 = sbr.rel (%p201) target = $region12
    $region11: #{tpu_custom_call.1} parent=5 // pred_region
      %s205 = ssub.s32 %s13, 1
      // Predicated region
      $region13: #{tpu_custom_call.1} parent=11 // pred_check
        %p206 = pneg %p60
      $region14: #{tpu_custom_call.1} parent=11 // pred_check_branch
        %208 = sbr.rel (%p206) target = $region16
      $region15: #{tpu_custom_call.1} parent=11 // pred_region
        _
      $region16: #{tpu_custom_call.1} parent=11 // pred_fallthru
        _
      // Predicated region
      $region17: #{tpu_custom_call.1} parent=11 // pred_check
        %p209 = pneg %p81
      $region18: #{tpu_custom_call.1} parent=11 // pred_check_branch
        %211 = sbr.rel (%p209) target = $region20
      $region19: #{tpu_custom_call.1} parent=11 // pred_region
        _
      $region20: #{tpu_custom_call.1} parent=11 // pred_fallthru
        _
      // Predicated region
      $region21: #{tpu_custom_call.1} parent=11 // pred_check
        %p212 = pneg %p102
      $region22: #{tpu_custom_call.1} parent=11 // pred_check_branch
        %214 = sbr.rel (%p212) target = $region24
      $region23: #{tpu_custom_call.1} parent=11 // pred_region
        _
      $region24: #{tpu_custom_call.1} parent=11 // pred_fallthru
        _
      // Predicated region
      $region25: #{tpu_custom_call.1} parent=11 // pred_check
        %p215 = pneg %p123
      $region26: #{tpu_custom_call.1} parent=11 // pred_check_branch
        %217 = sbr.rel (%p215) target = $region28
      $region27: #{tpu_custom_call.1} parent=11 // pred_region
        _
      $region28: #{tpu_custom_call.1} parent=11 // pred_fallthru
        _
      // Predicated region
      $region29: #{tpu_custom_call.1} parent=11 // pred_check
        %p218 = pneg %p144
      $region30: #{tpu_custom_call.1} parent=11 // pred_check_branch
        %220 = sbr.rel (%p218) target = $region32
      $region31: #{tpu_custom_call.1} parent=11 // pred_region
        _
      $region32: #{tpu_custom_call.1} parent=11 // pred_fallthru
        _
      // Predicated region
      $region33: #{tpu_custom_call.1} parent=11 // pred_check
        %p221 = pneg %p165
      $region34: #{tpu_custom_call.1} parent=11 // pred_check_branch
        %223 = sbr.rel (%p221) target = $region36
      $region35: #{tpu_custom_call.1} parent=11 // pred_region
        _
      $region36: #{tpu_custom_call.1} parent=11 // pred_fallthru
        _
    $region12: #{tpu_custom_call.1} parent=5 // pred_fallthru
      _
    %p224 = scmp.lt.s32.totalorder %s13, 2
    // Predicated region
    $region37: #{tpu_custom_call.1} parent=5 // pred_check
      %p225 = pneg %p224
    $region38: #{tpu_custom_call.1} parent=5 // pred_check_branch
      %227 = sbr.rel (%p225) target = $region40
    $region39: #{tpu_custom_call.1} parent=5 // pred_region
      // Predicated region
      $region41: #{tpu_custom_call.1} parent=39 // pred_check
        %p228 = pneg %p33
      $region42: #{tpu_custom_call.1} parent=39 // pred_check_branch
        %230 = sbr.rel (%p228) target = $region44
      $region43: #{tpu_custom_call.1} parent=39 // pred_region
        %p231 = scmp.lt.s32.totalorder %s13, 1
        %s232 = scalar_select %p231, %s13, 1
        %s233 = smul.addr %s232, 4
        %s234 = smul.addr %s233, 8
        %s235 = scalar_lea.vmem %s0, %s234
      $region44: #{tpu_custom_call.1} parent=39 // pred_fallthru
        _
    $region40: #{tpu_custom_call.1} parent=5 // pred_fallthru
      _
    %p236 = scmp.le.s32.totalorder 1, %s13
    %p237 = scmp.lt.s32.totalorder %s13, 3
    %p238 = pnand %p236, %p237
    %p239 = pneg %p238
    // Predicated region
    $region45: #{tpu_custom_call.1} parent=5 // pred_check
      _
    $region46: #{tpu_custom_call.1} parent=5 // pred_check_branch
      %241 = sbr.rel (%p238) target = $region48
    $region47: #{tpu_custom_call.1} parent=5 // pred_region
      %s242 = ssub.s32 %s13, 1
      %p243 = scmp.lt.s32.totalorder %s18, 1
      %s244 = scalar_select %p243, %s18, 1
      %s245 = smul.addr %s244, 4
      %s246 = smul.addr %s245, 8
      %s247 = scalar_lea.vmem %s0, %s246
      %p248 = pneg %p39
      %p249 = pneg %p36
      %p250 = pneg %p60
      %p251 = pneg %p57
      %p252 = pneg %p81
      %p253 = pneg %p78
      %p254 = pneg %p102
      %p255 = pneg %p99
      %p256 = pneg %p123
      %p257 = pneg %p120
      %p258 = pneg %p144
      %p259 = pneg %p141
      %p260 = pneg %p165
      %p261 = pneg %p162
      %p262 = pneg %p191
      %p263 = pneg %p188
      %p264 = scmp.lt.s32.totalorder %s18, 1
      %s265 = scalar_select %p264, %s18, 1
      %s266 = smul.addr %s265, 4
      %s267 = smul.addr %s266, 8
      %s268 = scalar_lea.vmem %s7, %s267
      %p269 = scmp.lt.s32.totalorder %s18, 1
      %s270 = scalar_select %p269, %s18, 1
      %s271 = smul.addr %s270, 4
      %s272 = smul.addr %s271, 8
      %s273 = scalar_lea.vmem %s0, %s272
      %p274 = scmp.lt.s32.totalorder %s18, 1
      %s275 = scalar_select %p274, %s18, 1
      %s276 = smul.addr %s275, 4
      %s277 = smul.addr %s276, 8
      %s278 = scalar_lea.vmem %s7, %s277
      %v279 = vlaneseq
      %v280 = vand.u32 %v279, 127
      %vm281 = vcmp.gt.s32.totalorder %v280, 0
      %vm282 = vcmp.lt.s32.totalorder %v280, 15
      %v283 = vld [vmem:[%s1] sm:$0xff]
      %v284 = vld [vmem:[%s1 + $0x8] sm:$0xff]
      %v285 = vld [vmem:[%s1 + $0x10] sm:$0xff]
      %v286 = vld [vmem:[%s1 + $0x18] sm:$0xff]
      %s287 = scalar_lea.vmem %s1, 32
      %v288 = vld [vmem:[%s287] sm:$0xff]
      %v289 = vld [vmem:[%s287 + $0x8] sm:$0xff]
      %v290 = vld [vmem:[%s287 + $0x10] sm:$0xff]
      %v291 = vld [vmem:[%s287 + $0x18] sm:$0xff]
      %s292 = scalar_lea.vmem %s1, 64
      %v293 = vld [vmem:[%s292] sm:$0xff]
      %v294 = vld [vmem:[%s292 + $0x8] sm:$0xff]
      %v295 = vld [vmem:[%s292 + $0x10] sm:$0xff]
      %v296 = vld [vmem:[%s292 + $0x18] sm:$0xff]
      %v297 = vld [vmem:[%s3] sm:$0xff]
      %v298 = vld [vmem:[%s3 + $0x8] sm:$0xff]
      %v299 = vld [vmem:[%s3 + $0x10] sm:$0xff]
      %v300 = vld [vmem:[%s3 + $0x18] sm:$0xff]
      %s301 = scalar_lea.vmem %s3, 32
      %v302 = vld [vmem:[%s301] sm:$0xff]
      %v303 = vld [vmem:[%s301 + $0x8] sm:$0xff]
      %v304 = vld [vmem:[%s301 + $0x10] sm:$0xff]
      %v305 = vld [vmem:[%s301 + $0x18] sm:$0xff]
      %s306 = scalar_lea.vmem %s3, 64
      %v307 = vld [vmem:[%s306] sm:$0xff]
      %v308 = vld [vmem:[%s306 + $0x8] sm:$0xff]
      %v309 = vld [vmem:[%s306 + $0x10] sm:$0xff]
      %v310 = vld [vmem:[%s306 + $0x18] sm:$0xff]
      %v311 = vld [vmem:[%s2] sm:$0xff]
      %v312 = vld [vmem:[%s2 + $0x8] sm:$0xff]
      %v313 = vld [vmem:[%s2 + $0x10] sm:$0xff]
      %v314 = vld [vmem:[%s2 + $0x18] sm:$0xff]
      %v315 = vld [vmem:[%s4] sm:$0xff]
      %v316 = vld [vmem:[%s4 + $0x8] sm:$0xff]
      %v317 = vld [vmem:[%s4 + $0x10] sm:$0xff]
      %v318 = vld [vmem:[%s4 + $0x18] sm:$0xff]
      %v319 = vld [vmem:[%s5] sm:$0xff]
      %v320 = vld [vmem:[%s6] sm:$0xff]
      %v321 = vld [vmem:[%s6 + $0x8] sm:$0xff]
      %v322 = vld [vmem:[%s6 + $0x10] sm:$0xff]
      %v323 = vld [vmem:[%s6 + $0x18] sm:$0xff]
      %v324 = vld [vmem:[%s273] sm:$0xff]
      %v325 = vld [vmem:[%s273 + $0x8] sm:$0xff]
      %v326 = vld [vmem:[%s273 + $0x10] sm:$0xff]
      %v327 = vld [vmem:[%s273 + $0x18] sm:$0xff]
      %332 = vrot.lane.b32.xlu0 %v324, 113
      %v333 = vpop.permute.xlu0 %332
      %334 = vrot.lane.b32.xlu0 %v325, 113
      %v335 = vpop.permute.xlu0 %334
      %336 = vrot.lane.b32.xlu0 %v326, 113
      %v337 = vpop.permute.xlu0 %336
      %338 = vrot.lane.b32.xlu0 %v327, 113
      %v339 = vpop.permute.xlu0 %338
      %344 = vrot.lane.b32.xlu0 %v324, 1
      %v345 = vpop.permute.xlu0 %344
      %346 = vrot.lane.b32.xlu0 %v325, 1
      %v347 = vpop.permute.xlu0 %346
      %348 = vrot.lane.b32.xlu0 %v326, 1
      %v349 = vpop.permute.xlu0 %348
      %350 = vrot.lane.b32.xlu0 %v327, 1
      %v351 = vpop.permute.xlu0 %350
      %vm356 = vcmask 7168
      %v357 = vsel %vm356, %v333, %v345
      %v358 = vsel %vm356, %v335, %v347
      %v359 = vsel %vm356, %v337, %v349
      %v360 = vsel %vm356, %v339, %v351
      %v361 = vsel %vm281, %v357, 0.0
      %v362 = vsel %vm281, %v358, 0.0
      %v363 = vsel %vm281, %v359, 0.0
      %v364 = vsel %vm281, %v360, 0.0
      %365 = vrot.lane.b32.xlu0 %v324, 127
      %v366 = vpop.permute.xlu0 %365
      %367 = vrot.lane.b32.xlu0 %v325, 127
      %v368 = vpop.permute.xlu0 %367
      %369 = vrot.lane.b32.xlu0 %v326, 127
      %v370 = vpop.permute.xlu0 %369
      %371 = vrot.lane.b32.xlu0 %v327, 127
      %v372 = vpop.permute.xlu0 %371
      %377 = vrot.lane.b32.xlu0 %v324, 15
      %v378 = vpop.permute.xlu0 %377
      %379 = vrot.lane.b32.xlu0 %v325, 15
      %v380 = vpop.permute.xlu0 %379
      %381 = vrot.lane.b32.xlu0 %v326, 15
      %v382 = vpop.permute.xlu0 %381
      %383 = vrot.lane.b32.xlu0 %v327, 15
      %v384 = vpop.permute.xlu0 %383
      %vm389 = vcmask 121856
      %v390 = vsel %vm389, %v366, %v378
      %v391 = vsel %vm389, %v368, %v380
      %v392 = vsel %vm389, %v370, %v382
      %v393 = vsel %vm389, %v372, %v384
      %v394 = vsel %vm282, %v390, 0.0
      %v395 = vsel %vm282, %v391, 0.0
      %v396 = vsel %vm282, %v392, 0.0
      %v397 = vsel %vm282, %v393, 0.0
      %vm398 = vcmask 261120
      %v400 = vsel %vm398, %v288, 0
      %v403 = vsel %vm398, %v289, 0
      %v406 = vsel %vm398, %v290, 0
      %v409 = vsel %vm398, %v291, 0
      %411 = vmatprep.subr.mxu0 0.0
      %412 = vmatpush1.msra.mxu0 %v324
      %413 = vmatprep.subr.mxu0 0.0
      %414 = vmatpush1.msra.mxu0 %v325
      %415 = vmatprep.subr.mxu0 0.0
      %416 = vmatpush1.msra.mxu0 %v326
      %417 = vmatprep.subr.mxu0 0.0
      %418 = vmatpush1.msra.mxu0 %v327
      %419 = vmatprep.subr.mxu0 0.0
      %420 = vmatpush1.msra.mxu0 0.0
      %421 = vmatprep.subr.mxu0 0.0
      %422 = vmatpush1.msra.mxu0 0.0
      %423 = vmatprep.subr.mxu0 0.0
      %424 = vmatpush1.msra.mxu0 0.0
      %425 = vmatprep.subr.mxu0 0.0
      %426 = vmatpush1.msra.mxu0 0.0
      %427 = vmatprep.subr.mxu0 0.0
      %428 = vmatpush1.msra.mxu0 0.0
      %429 = vmatprep.subr.mxu0 0.0
      %430 = vmatpush1.msra.mxu0 0.0
      %431 = vmatprep.subr.mxu0 0.0
      %432 = vmatpush1.msra.mxu0 0.0
      %433 = vmatprep.subr.mxu0 0.0
      %434 = vmatpush1.msra.mxu0 0.0
      %435 = vmatprep.subr.mxu0 0.0
      %436 = vmatpush1.msra.mxu0 0.0
      %437 = vmatprep.subr.mxu0 0.0
      %438 = vmatpush1.msra.mxu0 0.0
      %439 = vmatprep.subr.mxu0 0.0
      %440 = vmatpush1.msra.mxu0 0.0
      %441 = vmatprep.subr.mxu0 0.0
      %442 = vmatpush1.msra.mxu0 0.0
      %443 = vmatprep.subr.mxu0 0.0
      %444 = vmatpush1.msra.mxu0 0.0
      %445 = vmatprep.subr.mxu0 0.0
      %446 = vmatpush1.msra.mxu0 0.0
      %447 = vmatprep.subr.mxu0 0.0
      %448 = vmatpush1.msra.mxu0 0.0
      %449 = vmatprep.subr.mxu0 0.0
      %450 = vmatpush1.msra.mxu0 0.0
      %451 = vmatprep.subr.mxu0 0.0
      %452 = vmatpush1.msra.mxu0 0.0
      %453 = vmatprep.subr.mxu0 0.0
      %454 = vmatpush1.msra.mxu0 0.0
      %455 = vmatprep.subr.mxu0 0.0
      %456 = vmatpush1.msra.mxu0 0.0
      %457 = vmatprep.subr.mxu0 0.0
      %458 = vmatpush1.msra.mxu0 0.0
      %459 = vmatprep.subr.mxu0 0.0
      %460 = vmatpush1.msra.mxu0 0.0
      %461 = vmatprep.subr.mxu0 0.0
      %462 = vmatpush1.msra.mxu0 0.0
      %463 = vmatprep.subr.mxu0 0.0
      %464 = vmatpush1.msra.mxu0 0.0
      %465 = vmatprep.subr.mxu0 0.0
      %466 = vmatpush1.msra.mxu0 0.0
      %467 = vmatprep.subr.mxu0 0.0
      %468 = vmatpush1.msra.mxu0 0.0
      %469 = vmatprep.subr.mxu0 0.0
      %470 = vmatpush1.msra.mxu0 0.0
      %471 = vmatprep.subr.mxu0 0.0
      %472 = vmatpush1.msra.mxu0 0.0
      %473 = vmatprep.subr.mxu0 0.0
      %474 = vmatpush1.msra.mxu0 0.0
      %475 = vmatprep.mubr.f32.mxu0 0.0
      %476 = vmatmul.mubr.f32.gmra.mrb[0].mxu0 %v400
      %v477 = vpop.f32.mrb[0].mxu0
      %v478 = vadd.f32 0.0, %v477
      %v479 = vpop.f32.mrb[0].mxu0
      %480 = vmatprep.mubr.f32.mxu0 0.0
      %481 = vmatmul.mubr.f32.gmra.mrb[0].mxu0 %v403
      %v482 = vpop.f32.mrb[0].mxu0
      %v483 = vadd.f32 0.0, %v482
      %v484 = vpop.f32.mrb[0].mxu0
      %485 = vmatprep.mubr.f32.mxu0 0.0
      %486 = vmatmul.mubr.f32.gmra.mrb[0].mxu0 %v406
      %v487 = vpop.f32.mrb[0].mxu0
      %v488 = vadd.f32 0.0, %v487
      %v489 = vpop.f32.mrb[0].mxu0
      %490 = vmatprep.mubr.f32.mxu0 0.0
      %491 = vmatmul.mubr.f32.gmra.mrb[0].mxu0 %v409
      %v492 = vpop.f32.mrb[0].mxu0
      %v493 = vadd.f32 0.0, %v492
      %v494 = vpop.f32.mrb[0].mxu0
      %495 = vdwg.mxu0
      %v497 = vsel %vm398, %v283, 0
      %v500 = vsel %vm398, %v284, 0
      %v503 = vsel %vm398, %v285, 0
      %v506 = vsel %vm398, %v286, 0
      %508 = vmatprep.subr.mxu0 0.0
      %509 = vmatpush1.msra.mxu0 %v361
      %510 = vmatprep.subr.mxu0 0.0
      %511 = vmatpush1.msra.mxu0 %v362
      %512 = vmatprep.subr.mxu0 0.0
      %513 = vmatpush1.msra.mxu0 %v363
      %514 = vmatprep.subr.mxu0 0.0
      %515 = vmatpush1.msra.mxu0 %v364
      %516 = vmatprep.subr.mxu0 0.0
      %517 = vmatpush1.msra.mxu0 0.0
      %518 = vmatprep.subr.mxu0 0.0
      %519 = vmatpush1.msra.mxu0 0.0
      %520 = vmatprep.subr.mxu0 0.0
      %521 = vmatpush1.msra.mxu0 0.0
      %522 = vmatprep.subr.mxu0 0.0
      %523 = vmatpush1.msra.mxu0 0.0
      %524 = vmatprep.subr.mxu0 0.0
      %525 = vmatpush1.msra.mxu0 0.0
      %526 = vmatprep.subr.mxu0 0.0
      %527 = vmatpush1.msra.mxu0 0.0
      %528 = vmatprep.subr.mxu0 0.0
      %529 = vmatpush1.msra.mxu0 0.0
      %530 = vmatprep.subr.mxu0 0.0
      %531 = vmatpush1.msra.mxu0 0.0
      %532 = vmatprep.subr.mxu0 0.0
      %533 = vmatpush1.msra.mxu0 0.0
      %534 = vmatprep.subr.mxu0 0.0
      %535 = vmatpush1.msra.mxu0 0.0
      %536 = vmatprep.subr.mxu0 0.0
      %537 = vmatpush1.msra.mxu0 0.0
      %538 = vmatprep.subr.mxu0 0.0
      %539 = vmatpush1.msra.mxu0 0.0
      %540 = vmatprep.subr.mxu0 0.0
      %541 = vmatpush1.msra.mxu0 0.0
      %542 = vmatprep.subr.mxu0 0.0
      %543 = vmatpush1.msra.mxu0 0.0
      %544 = vmatprep.subr.mxu0 0.0
      %545 = vmatpush1.msra.mxu0 0.0
      %546 = vmatprep.subr.mxu0 0.0
      %547 = vmatpush1.msra.mxu0 0.0
      %548 = vmatprep.subr.mxu0 0.0
      %549 = vmatpush1.msra.mxu0 0.0
      %550 = vmatprep.subr.mxu0 0.0
      %551 = vmatpush1.msra.mxu0 0.0
      %552 = vmatprep.subr.mxu0 0.0
      %553 = vmatpush1.msra.mxu0 0.0
      %554 = vmatprep.subr.mxu0 0.0
      %555 = vmatpush1.msra.mxu0 0.0
      %556 = vmatprep.subr.mxu0 0.0
      %557 = vmatpush1.msra.mxu0 0.0
      %558 = vmatprep.subr.mxu0 0.0
      %559 = vmatpush1.msra.mxu0 0.0
      %560 = vmatprep.subr.mxu0 0.0
      %561 = vmatpush1.msra.mxu0 0.0
      %562 = vmatprep.subr.mxu0 0.0
      %563 = vmatpush1.msra.mxu0 0.0
      %564 = vmatprep.subr.mxu0 0.0
      %565 = vmatpush1.msra.mxu0 0.0
      %566 = vmatprep.subr.mxu0 0.0
      %567 = vmatpush1.msra.mxu0 0.0
      %568 = vmatprep.subr.mxu0 0.0
      %569 = vmatpush1.msra.mxu0 0.0
      %570 = vmatprep.subr.mxu0 0.0
      %571 = vmatpush1.msra.mxu0 0.0
      %572 = vmatprep.mubr.f32.mxu0 0.0
      %573 = vmatmul.mubr.f32.gmra.mrb[0].mxu0 %v497
      %v574 = vpop.f32.mrb[0].mxu0
      %v575 = vadd.f32 %v478, %v574
      %v576 = vpop.f32.mrb[0].mxu0
      %577 = vmatprep.mubr.f32.mxu0 0.0
      %578 = vmatmul.mubr.f32.gmra.mrb[0].mxu0 %v500
      %v579 = vpop.f32.mrb[0].mxu0
      %v580 = vadd.f32 %v483, %v579
      %v581 = vpop.f32.mrb[0].mxu0
      %582 = vmatprep.mubr.f32.mxu0 0.0
      %583 = vmatmul.mubr.f32.gmra.mrb[0].mxu0 %v503
      %v584 = vpop.f32.mrb[0].mxu0
      %v585 = vadd.f32 %v488, %v584
      %v586 = vpop.f32.mrb[0].mxu0
      %587 = vmatprep.mubr.f32.mxu0 0.0
      %588 = vmatmul.mubr.f32.gmra.mrb[0].mxu0 %v506
      %v589 = vpop.f32.mrb[0].mxu0
      %v590 = vadd.f32 %v493, %v589
      %v591 = vpop.f32.mrb[0].mxu0
      %592 = vdwg.mxu0
      %v594 = vsel %vm398, %v293, 0
      %v597 = vsel %vm398, %v294, 0
      %v600 = vsel %vm398, %v295, 0
      %v603 = vsel %vm398, %v296, 0
      %605 = vmatprep.subr.mxu0 0.0
      %606 = vmatpush1.msra.mxu0 %v394
      %607 = vmatprep.subr.mxu0 0.0
      %608 = vmatpush1.msra.mxu0 %v395
      %609 = vmatprep.subr.mxu0 0.0
      %610 = vmatpush1.msra.mxu0 %v396
      %611 = vmatprep.subr.mxu0 0.0
      %612 = vmatpush1.msra.mxu0 %v397
      %613 = vmatprep.subr.mxu0 0.0
      %614 = vmatpush1.msra.mxu0 0.0
      %615 = vmatprep.subr.mxu0 0.0
      %616 = vmatpush1.msra.mxu0 0.0
      %617 = vmatprep.subr.mxu0 0.0
      %618 = vmatpush1.msra.mxu0 0.0
      %619 = vmatprep.subr.mxu0 0.0
      %620 = vmatpush1.msra.mxu0 0.0
      %621 = vmatprep.subr.mxu0 0.0
      %622 = vmatpush1.msra.mxu0 0.0
      %623 = vmatprep.subr.mxu0 0.0
      %624 = vmatpush1.msra.mxu0 0.0
      %625 = vmatprep.subr.mxu0 0.0
      %626 = vmatpush1.msra.mxu0 0.0
      %627 = vmatprep.subr.mxu0 0.0
      %628 = vmatpush1.msra.mxu0 0.0
      %629 = vmatprep.subr.mxu0 0.0
      %630 = vmatpush1.msra.mxu0 0.0
      %631 = vmatprep.subr.mxu0 0.0
      %632 = vmatpush1.msra.mxu0 0.0
      %633 = vmatprep.subr.mxu0 0.0
      %634 = vmatpush1.msra.mxu0 0.0
      %635 = vmatprep.subr.mxu0 0.0
      %636 = vmatpush1.msra.mxu0 0.0
      %637 = vmatprep.subr.mxu0 0.0
      %638 = vmatpush1.msra.mxu0 0.0
      %639 = vmatprep.subr.mxu0 0.0
      %640 = vmatpush1.msra.mxu0 0.0
      %641 = vmatprep.subr.mxu0 0.0
      %642 = vmatpush1.msra.mxu0 0.0
      %643 = vmatprep.subr.mxu0 0.0
      %644 = vmatpush1.msra.mxu0 0.0
      %645 = vmatprep.subr.mxu0 0.0
      %646 = vmatpush1.msra.mxu0 0.0
      %647 = vmatprep.subr.mxu0 0.0
      %648 = vmatpush1.msra.mxu0 0.0
      %649 = vmatprep.subr.mxu0 0.0
      %650 = vmatpush1.msra.mxu0 0.0
      %651 = vmatprep.subr.mxu0 0.0
      %652 = vmatpush1.msra.mxu0 0.0
      %653 = vmatprep.subr.mxu0 0.0
      %654 = vmatpush1.msra.mxu0 0.0
      %655 = vmatprep.subr.mxu0 0.0
      %656 = vmatpush1.msra.mxu0 0.0
      %657 = vmatprep.subr.mxu0 0.0
      %658 = vmatpush1.msra.mxu0 0.0
      %659 = vmatprep.subr.mxu0 0.0
      %660 = vmatpush1.msra.mxu0 0.0
      %661 = vmatprep.subr.mxu0 0.0
      %662 = vmatpush1.msra.mxu0 0.0
      %663 = vmatprep.subr.mxu0 0.0
      %664 = vmatpush1.msra.mxu0 0.0
      %665 = vmatprep.subr.mxu0 0.0
      %666 = vmatpush1.msra.mxu0 0.0
      %667 = vmatprep.subr.mxu0 0.0
      %668 = vmatpush1.msra.mxu0 0.0
      %669 = vmatprep.mubr.f32.mxu0 0.0
      %670 = vmatmul.mubr.f32.gmra.mrb[0].mxu0 %v594
      %v671 = vpop.f32.mrb[0].mxu0
      %v672 = vadd.f32 0.0, %v671
      %v673 = vpop.f32.mrb[0].mxu0
      %674 = vmatprep.mubr.f32.mxu0 0.0
      %675 = vmatmul.mubr.f32.gmra.mrb[0].mxu0 %v597
      %v676 = vpop.f32.mrb[0].mxu0
      %v677 = vadd.f32 0.0, %v676
      %v678 = vpop.f32.mrb[0].mxu0
      %679 = vmatprep.mubr.f32.mxu0 0.0
      %680 = vmatmul.mubr.f32.gmra.mrb[0].mxu0 %v600
      %v681 = vpop.f32.mrb[0].mxu0
      %v682 = vadd.f32 0.0, %v681
      %v683 = vpop.f32.mrb[0].mxu0
      %684 = vmatprep.mubr.f32.mxu0 0.0
      %685 = vmatmul.mubr.f32.gmra.mrb[0].mxu0 %v603
      %v686 = vpop.f32.mrb[0].mxu0
      %v687 = vadd.f32 0.0, %v686
      %v688 = vpop.f32.mrb[0].mxu0
      %689 = vdwg.mxu0
      %v690 = vadd.f32 %v575, %v672
      %v691 = vadd.f32 %v580, %v677
      %v692 = vadd.f32 %v585, %v682
      %v693 = vadd.f32 %v590, %v687
      %695 = vset.pattern.permute.xlu0 0
      %696 = vperm.xlu0 %695, %v311
      %v697 = vpop.permute.xlu0 %696
      %700 = vset.pattern.permute.xlu0 0
      %701 = vperm.xlu0 %700, %v312
      %v702 = vpop.permute.xlu0 %701
      %705 = vset.pattern.permute.xlu0 0
      %706 = vperm.xlu0 %705, %v313
      %v707 = vpop.permute.xlu0 %706
      %710 = vset.pattern.permute.xlu0 0
      %711 = vperm.xlu0 %710, %v314
      %v712 = vpop.permute.xlu0 %711
      %v714 = vadd.f32 %v690, %v697
      %v715 = vadd.f32 %v691, %v702
      %v716 = vadd.f32 %v692, %v707
      %v717 = vadd.f32 %v693, %v712
      %v718 = vmax.f32 %v714, 0.0
      %v719 = vmax.f32 %v715, 0.0
      %v720 = vmax.f32 %v716, 0.0
      %v721 = vmax.f32 %v717, 0.0
      %726 = vrot.lane.b32.xlu0 %v718, 113
      %v727 = vpop.permute.xlu0 %726
      %728 = vrot.lane.b32.xlu0 %v719, 113
      %v729 = vpop.permute.xlu0 %728
      %730 = vrot.lane.b32.xlu0 %v720, 113
      %v731 = vpop.permute.xlu0 %730
      %732 = vrot.lane.b32.xlu0 %v721, 113
      %v733 = vpop.permute.xlu0 %732
      %738 = vrot.lane.b32.xlu0 %v718, 1
      %v739 = vpop.permute.xlu0 %738
      %740 = vrot.lane.b32.xlu0 %v719, 1
      %v741 = vpop.permute.xlu0 %740
      %742 = vrot.lane.b32.xlu0 %v720, 1
      %v743 = vpop.permute.xlu0 %742
      %744 = vrot.lane.b32.xlu0 %v721, 1
      %v745 = vpop.permute.xlu0 %744
      %v750 = vsel %vm356, %v727, %v739
      %v751 = vsel %vm356, %v729, %v741
      %v752 = vsel %vm356, %v731, %v743
      %v753 = vsel %vm356, %v733, %v745
      %v754 = vsel %vm281, %v750, 0.0
      %v755 = vsel %vm281, %v751, 0.0
      %v756 = vsel %vm281, %v752, 0.0
      %v757 = vsel %vm281, %v753, 0.0
      %758 = vrot.lane.b32.xlu0 %v718, 127
      %v759 = vpop.permute.xlu0 %758
      %760 = vrot.lane.b32.xlu0 %v719, 127
      %v761 = vpop.permute.xlu0 %760
      %762 = vrot.lane.b32.xlu0 %v720, 127
      %v763 = vpop.permute.xlu0 %762
      %764 = vrot.lane.b32.xlu0 %v721, 127
      %v765 = vpop.permute.xlu0 %764
      %770 = vrot.lane.b32.xlu0 %v718, 15
      %v771 = vpop.permute.xlu0 %770
      %772 = vrot.lane.b32.xlu0 %v719, 15
      %v773 = vpop.permute.xlu0 %772
      %774 = vrot.lane.b32.xlu0 %v720, 15
      %v775 = vpop.permute.xlu0 %774
      %776 = vrot.lane.b32.xlu0 %v721, 15
      %v777 = vpop.permute.xlu0 %776
      %v782 = vsel %vm389, %v759, %v771
      %v783 = vsel %vm389, %v761, %v773
      %v784 = vsel %vm389, %v763, %v775
      %v785 = vsel %vm389, %v765, %v777
      %v786 = vsel %vm282, %v782, 0.0
      %v787 = vsel %vm282, %v783, 0.0
      %v788 = vsel %vm282, %v784, 0.0
      %v789 = vsel %vm282, %v785, 0.0
      %v791 = vsel %vm398, %v302, 0
      %v794 = vsel %vm398, %v303, 0
      %v797 = vsel %vm398, %v304, 0
      %v800 = vsel %vm398, %v305, 0
      %802 = vmatprep.subr.mxu0 0.0
      %803 = vmatpush1.msra.mxu0 %v718
      %804 = vmatprep.subr.mxu0 0.0
      %805 = vmatpush1.msra.mxu0 %v719
      %806 = vmatprep.subr.mxu0 0.0
      %807 = vmatpush1.msra.mxu0 %v720
      %808 = vmatprep.subr.mxu0 0.0
      %809 = vmatpush1.msra.mxu0 %v721
      %810 = vmatprep.subr.mxu0 0.0
      %811 = vmatpush1.msra.mxu0 0.0
      %812 = vmatprep.subr.mxu0 0.0
      %813 = vmatpush1.msra.mxu0 0.0
      %814 = vmatprep.subr.mxu0 0.0
      %815 = vmatpush1.msra.mxu0 0.0
      %816 = vmatprep.subr.mxu0 0.0
      %817 = vmatpush1.msra.mxu0 0.0
      %818 = vmatprep.subr.mxu0 0.0
      %819 = vmatpush1.msra.mxu0 0.0
      %820 = vmatprep.subr.mxu0 0.0
      %821 = vmatpush1.msra.mxu0 0.0
      %822 = vmatprep.subr.mxu0 0.0
      %823 = vmatpush1.msra.mxu0 0.0
      %824 = vmatprep.subr.mxu0 0.0
      %825 = vmatpush1.msra.mxu0 0.0
      %826 = vmatprep.subr.mxu0 0.0
      %827 = vmatpush1.msra.mxu0 0.0
      %828 = vmatprep.subr.mxu0 0.0
      %829 = vmatpush1.msra.mxu0 0.0
      %830 = vmatprep.subr.mxu0 0.0
      %831 = vmatpush1.msra.mxu0 0.0
      %832 = vmatprep.subr.mxu0 0.0
      %833 = vmatpush1.msra.mxu0 0.0
      %834 = vmatprep.subr.mxu0 0.0
      %835 = vmatpush1.msra.mxu0 0.0
      %836 = vmatprep.subr.mxu0 0.0
      %837 = vmatpush1.msra.mxu0 0.0
      %838 = vmatprep.subr.mxu0 0.0
      %839 = vmatpush1.msra.mxu0 0.0
      %840 = vmatprep.subr.mxu0 0.0
      %841 = vmatpush1.msra.mxu0 0.0
      %842 = vmatprep.subr.mxu0 0.0
      %843 = vmatpush1.msra.mxu0 0.0
      %844 = vmatprep.subr.mxu0 0.0
      %845 = vmatpush1.msra.mxu0 0.0
      %846 = vmatprep.subr.mxu0 0.0
      %847 = vmatpush1.msra.mxu0 0.0
      %848 = vmatprep.subr.mxu0 0.0
      %849 = vmatpush1.msra.mxu0 0.0
      %850 = vmatprep.subr.mxu0 0.0
      %851 = vmatpush1.msra.mxu0 0.0
      %852 = vmatprep.subr.mxu0 0.0
      %853 = vmatpush1.msra.mxu0 0.0
      %854 = vmatprep.subr.mxu0 0.0
      %855 = vmatpush1.msra.mxu0 0.0
      %856 = vmatprep.subr.mxu0 0.0
      %857 = vmatpush1.msra.mxu0 0.0
      %858 = vmatprep.subr.mxu0 0.0
      %859 = vmatpush1.msra.mxu0 0.0
      %860 = vmatprep.subr.mxu0 0.0
      %861 = vmatpush1.msra.mxu0 0.0
      %862 = vmatprep.subr.mxu0 0.0
      %863 = vmatpush1.msra.mxu0 0.0
      %864 = vmatprep.subr.mxu0 0.0
      %865 = vmatpush1.msra.mxu0 0.0
      %866 = vmatprep.mubr.f32.mxu0 0.0
      %867 = vmatmul.mubr.f32.gmra.mrb[0].mxu0 %v791
      %v868 = vpop.f32.mrb[0].mxu0
      %v869 = vadd.f32 0.0, %v868
      %v870 = vpop.f32.mrb[0].mxu0
      %871 = vmatprep.mubr.f32.mxu0 0.0
      %872 = vmatmul.mubr.f32.gmra.mrb[0].mxu0 %v794
      %v873 = vpop.f32.mrb[0].mxu0
      %v874 = vadd.f32 0.0, %v873
      %v875 = vpop.f32.mrb[0].mxu0
      %876 = vmatprep.mubr.f32.mxu0 0.0
      %877 = vmatmul.mubr.f32.gmra.mrb[0].mxu0 %v797
      %v878 = vpop.f32.mrb[0].mxu0
      %v879 = vadd.f32 0.0, %v878
      %v880 = vpop.f32.mrb[0].mxu0
      %881 = vmatprep.mubr.f32.mxu0 0.0
      %882 = vmatmul.mubr.f32.gmra.mrb[0].mxu0 %v800
      %v883 = vpop.f32.mrb[0].mxu0
      %v884 = vadd.f32 0.0, %v883
      %v885 = vpop.f32.mrb[0].mxu0
      %886 = vdwg.mxu0
      %v888 = vsel %vm398, %v297, 0
      %v891 = vsel %vm398, %v298, 0
      %v894 = vsel %vm398, %v299, 0
      %v897 = vsel %vm398, %v300, 0
      %899 = vmatprep.subr.mxu0 0.0
      %900 = vmatpush1.msra.mxu0 %v754
      %901 = vmatprep.subr.mxu0 0.0
      %902 = vmatpush1.msra.mxu0 %v755
      %903 = vmatprep.subr.mxu0 0.0
      %904 = vmatpush1.msra.mxu0 %v756
      %905 = vmatprep.subr.mxu0 0.0
      %906 = vmatpush1.msra.mxu0 %v757
      %907 = vmatprep.subr.mxu0 0.0
      %908 = vmatpush1.msra.mxu0 0.0
      %909 = vmatprep.subr.mxu0 0.0
      %910 = vmatpush1.msra.mxu0 0.0
      %911 = vmatprep.subr.mxu0 0.0
      %912 = vmatpush1.msra.mxu0 0.0
      %913 = vmatprep.subr.mxu0 0.0
      %914 = vmatpush1.msra.mxu0 0.0
      %915 = vmatprep.subr.mxu0 0.0
      %916 = vmatpush1.msra.mxu0 0.0
      %917 = vmatprep.subr.mxu0 0.0
      %918 = vmatpush1.msra.mxu0 0.0
      %919 = vmatprep.subr.mxu0 0.0
      %920 = vmatpush1.msra.mxu0 0.0
      %921 = vmatprep.subr.mxu0 0.0
      %922 = vmatpush1.msra.mxu0 0.0
      %923 = vmatprep.subr.mxu0 0.0
      %924 = vmatpush1.msra.mxu0 0.0
      %925 = vmatprep.subr.mxu0 0.0
      %926 = vmatpush1.msra.mxu0 0.0
      %927 = vmatprep.subr.mxu0 0.0
      %928 = vmatpush1.msra.mxu0 0.0
      %929 = vmatprep.subr.mxu0 0.0
      %930 = vmatpush1.msra.mxu0 0.0
      %931 = vmatprep.subr.mxu0 0.0
      %932 = vmatpush1.msra.mxu0 0.0
      %933 = vmatprep.subr.mxu0 0.0
      %934 = vmatpush1.msra.mxu0 0.0
      %935 = vmatprep.subr.mxu0 0.0
      %936 = vmatpush1.msra.mxu0 0.0
      %937 = vmatprep.subr.mxu0 0.0
      %938 = vmatpush1.msra.mxu0 0.0
      %939 = vmatprep.subr.mxu0 0.0
      %940 = vmatpush1.msra.mxu0 0.0
      %941 = vmatprep.subr.mxu0 0.0
      %942 = vmatpush1.msra.mxu0 0.0
      %943 = vmatprep.subr.mxu0 0.0
      %944 = vmatpush1.msra.mxu0 0.0
      %945 = vmatprep.subr.mxu0 0.0
      %946 = vmatpush1.msra.mxu0 0.0
      %947 = vmatprep.subr.mxu0 0.0
      %948 = vmatpush1.msra.mxu0 0.0
      %949 = vmatprep.subr.mxu0 0.0
      %950 = vmatpush1.msra.mxu0 0.0
      %951 = vmatprep.subr.mxu0 0.0
      %952 = vmatpush1.msra.mxu0 0.0
      %953 = vmatprep.subr.mxu0 0.0
      %954 = vmatpush1.msra.mxu0 0.0
      %955 = vmatprep.subr.mxu0 0.0
      %956 = vmatpush1.msra.mxu0 0.0
      %957 = vmatprep.subr.mxu0 0.0
      %958 = vmatpush1.msra.mxu0 0.0
      %959 = vmatprep.subr.mxu0 0.0
      %960 = vmatpush1.msra.mxu0 0.0
      %961 = vmatprep.subr.mxu0 0.0
      %962 = vmatpush1.msra.mxu0 0.0
      %963 = vmatprep.mubr.f32.mxu0 0.0
      %964 = vmatmul.mubr.f32.gmra.mrb[0].mxu0 %v888
      %v965 = vpop.f32.mrb[0].mxu0
      %v966 = vadd.f32 %v869, %v965
      %v967 = vpop.f32.mrb[0].mxu0
      %968 = vmatprep.mubr.f32.mxu0 0.0
      %969 = vmatmul.mubr.f32.gmra.mrb[0].mxu0 %v891
      %v970 = vpop.f32.mrb[0].mxu0
      %v971 = vadd.f32 %v874, %v970
      %v972 = vpop.f32.mrb[0].mxu0
      %973 = vmatprep.mubr.f32.mxu0 0.0
      %974 = vmatmul.mubr.f32.gmra.mrb[0].mxu0 %v894
      %v975 = vpop.f32.mrb[0].mxu0
      %v976 = vadd.f32 %v879, %v975
      %v977 = vpop.f32.mrb[0].mxu0
      %978 = vmatprep.mubr.f32.mxu0 0.0
      %979 = vmatmul.mubr.f32.gmra.mrb[0].mxu0 %v897
      %v980 = vpop.f32.mrb[0].mxu0
      %v981 = vadd.f32 %v884, %v980
      %v982 = vpop.f32.mrb[0].mxu0
      %983 = vdwg.mxu0
      %v985 = vsel %vm398, %v307, 0
      %v988 = vsel %vm398, %v308, 0
      %v991 = vsel %vm398, %v309, 0
      %v994 = vsel %vm398, %v310, 0
      %996 = vmatprep.subr.mxu0 0.0
      %997 = vmatpush1.msra.mxu0 %v786
      %998 = vmatprep.subr.mxu0 0.0
      %999 = vmatpush1.msra.mxu0 %v787
      %1000 = vmatprep.subr.mxu0 0.0
      %1001 = vmatpush1.msra.mxu0 %v788
      %1002 = vmatprep.subr.mxu0 0.0
      %1003 = vmatpush1.msra.mxu0 %v789
      %1004 = vmatprep.subr.mxu0 0.0
      %1005 = vmatpush1.msra.mxu0 0.0
      %1006 = vmatprep.subr.mxu0 0.0
      %1007 = vmatpush1.msra.mxu0 0.0
      %1008 = vmatprep.subr.mxu0 0.0
      %1009 = vmatpush1.msra.mxu0 0.0
      %1010 = vmatprep.subr.mxu0 0.0
      %1011 = vmatpush1.msra.mxu0 0.0
      %1012 = vmatprep.subr.mxu0 0.0
      %1013 = vmatpush1.msra.mxu0 0.0
      %1014 = vmatprep.subr.mxu0 0.0
      %1015 = vmatpush1.msra.mxu0 0.0
      %1016 = vmatprep.subr.mxu0 0.0
      %1017 = vmatpush1.msra.mxu0 0.0
      %1018 = vmatprep.subr.mxu0 0.0
      %1019 = vmatpush1.msra.mxu0 0.0
      %1020 = vmatprep.subr.mxu0 0.0
      %1021 = vmatpush1.msra.mxu0 0.0
      %1022 = vmatprep.subr.mxu0 0.0
      %1023 = vmatpush1.msra.mxu0 0.0
      %1024 = vmatprep.subr.mxu0 0.0
      %1025 = vmatpush1.msra.mxu0 0.0
      %1026 = vmatprep.subr.mxu0 0.0
      %1027 = vmatpush1.msra.mxu0 0.0
      %1028 = vmatprep.subr.mxu0 0.0
      %1029 = vmatpush1.msra.mxu0 0.0
      %1030 = vmatprep.subr.mxu0 0.0
      %1031 = vmatpush1.msra.mxu0 0.0
      %1032 = vmatprep.subr.mxu0 0.0
      %1033 = vmatpush1.msra.mxu0 0.0
      %1034 = vmatprep.subr.mxu0 0.0
      %1035 = vmatpush1.msra.mxu0 0.0
      %1036 = vmatprep.subr.mxu0 0.0
      %1037 = vmatpush1.msra.mxu0 0.0
      %1038 = vmatprep.subr.mxu0 0.0
      %1039 = vmatpush1.msra.mxu0 0.0
      %1040 = vmatprep.subr.mxu0 0.0
      %1041 = vmatpush1.msra.mxu0 0.0
      %1042 = vmatprep.subr.mxu0 0.0
      %1043 = vmatpush1.msra.mxu0 0.0
      %1044 = vmatprep.subr.mxu0 0.0
      %1045 = vmatpush1.msra.mxu0 0.0
      %1046 = vmatprep.subr.mxu0 0.0
      %1047 = vmatpush1.msra.mxu0 0.0
      %1048 = vmatprep.subr.mxu0 0.0
      %1049 = vmatpush1.msra.mxu0 0.0
      %1050 = vmatprep.subr.mxu0 0.0
      %1051 = vmatpush1.msra.mxu0 0.0
      %1052 = vmatprep.subr.mxu0 0.0
      %1053 = vmatpush1.msra.mxu0 0.0
      %1054 = vmatprep.subr.mxu0 0.0
      %1055 = vmatpush1.msra.mxu0 0.0
      %1056 = vmatprep.subr.mxu0 0.0
      %1057 = vmatpush1.msra.mxu0 0.0
      %1058 = vmatprep.subr.mxu0 0.0
      %1059 = vmatpush1.msra.mxu0 0.0
      %1060 = vmatprep.mubr.f32.mxu0 0.0
      %1061 = vmatmul.mubr.f32.gmra.mrb[0].mxu0 %v985
      %v1062 = vpop.f32.mrb[0].mxu0
      %v1063 = vadd.f32 0.0, %v1062
      %v1064 = vpop.f32.mrb[0].mxu0
      %1065 = vmatprep.mubr.f32.mxu0 0.0
      %1066 = vmatmul.mubr.f32.gmra.mrb[0].mxu0 %v988
      %v1067 = vpop.f32.mrb[0].mxu0
      %v1068 = vadd.f32 0.0, %v1067
      %v1069 = vpop.f32.mrb[0].mxu0
      %1070 = vmatprep.mubr.f32.mxu0 0.0
      %1071 = vmatmul.mubr.f32.gmra.mrb[0].mxu0 %v991
      %v1072 = vpop.f32.mrb[0].mxu0
      %v1073 = vadd.f32 0.0, %v1072
      %v1074 = vpop.f32.mrb[0].mxu0
      %1075 = vmatprep.mubr.f32.mxu0 0.0
      %1076 = vmatmul.mubr.f32.gmra.mrb[0].mxu0 %v994
      %v1077 = vpop.f32.mrb[0].mxu0
      %v1078 = vadd.f32 0.0, %v1077
      %v1079 = vpop.f32.mrb[0].mxu0
      %1080 = vdwg.mxu0
      %v1081 = vadd.f32 %v966, %v1063
      %v1082 = vadd.f32 %v971, %v1068
      %v1083 = vadd.f32 %v976, %v1073
      %v1084 = vadd.f32 %v981, %v1078
      %1086 = vset.pattern.permute.xlu0 0
      %1087 = vperm.xlu0 %1086, %v315
      %v1088 = vpop.permute.xlu0 %1087
      %1091 = vset.pattern.permute.xlu0 0
      %1092 = vperm.xlu0 %1091, %v316
      %v1093 = vpop.permute.xlu0 %1092
      %1096 = vset.pattern.permute.xlu0 0
      %1097 = vperm.xlu0 %1096, %v317
      %v1098 = vpop.permute.xlu0 %1097
      %1101 = vset.pattern.permute.xlu0 0
      %1102 = vperm.xlu0 %1101, %v318
      %v1103 = vpop.permute.xlu0 %1102
      %v1105 = vadd.f32 %v1081, %v1088
      %v1106 = vadd.f32 %v1082, %v1093
      %v1107 = vadd.f32 %v1083, %v1098
      %v1108 = vadd.f32 %v1084, %v1103
      %vm1109 = vcmask 130048
      %v1110 = vsel %vm1109, %v1105, 0.0
      %1111 = vadd.xlane.f32.xlu0 %v1110
      %v1112 = vpop.xlane.xlu0 %1111
      %v1113 = vsel %vm1109, %v1106, 0.0
      %1114 = vadd.xlane.f32.xlu0 %v1113
      %v1115 = vpop.xlane.xlu0 %1114
      %v1116 = vsel %vm1109, %v1107, 0.0
      %1117 = vadd.xlane.f32.xlu0 %v1116
      %v1118 = vpop.xlane.xlu0 %1117
      %v1119 = vsel %vm1109, %v1108, 0.0
      %1120 = vadd.xlane.f32.xlu0 %v1119
      %v1121 = vpop.xlane.xlu0 %1120
      %v1122 = vrcp.pop 16.0
      %v1123 = vmul.f32 %v1112, %v1122
      %v1124 = vmul.f32 %v1115, %v1122
      %v1125 = vmul.f32 %v1118, %v1122
      %v1126 = vmul.f32 %v1121, %v1122
      %v1128 = vsel %vm398, %v319, 0
      %1130 = vmatprep.subr.mxu0 0.0
      %1131 = vmatpush1.msra.mxu0 %v1123
      %1132 = vmatprep.subr.mxu0 0.0
      %1133 = vmatpush1.msra.mxu0 %v1124
      %1134 = vmatprep.subr.mxu0 0.0
      %1135 = vmatpush1.msra.mxu0 %v1125
      %1136 = vmatprep.subr.mxu0 0.0
      %1137 = vmatpush1.msra.mxu0 %v1126
      %1138 = vmatprep.subr.mxu0 0.0
      %1139 = vmatpush1.msra.mxu0 0.0
      %1140 = vmatprep.subr.mxu0 0.0
      %1141 = vmatpush1.msra.mxu0 0.0
      %1142 = vmatprep.subr.mxu0 0.0
      %1143 = vmatpush1.msra.mxu0 0.0
      %1144 = vmatprep.subr.mxu0 0.0
      %1145 = vmatpush1.msra.mxu0 0.0
      %1146 = vmatprep.subr.mxu0 0.0
      %1147 = vmatpush1.msra.mxu0 0.0
      %1148 = vmatprep.subr.mxu0 0.0
      %1149 = vmatpush1.msra.mxu0 0.0
      %1150 = vmatprep.subr.mxu0 0.0
      %1151 = vmatpush1.msra.mxu0 0.0
      %1152 = vmatprep.subr.mxu0 0.0
      %1153 = vmatpush1.msra.mxu0 0.0
      %1154 = vmatprep.subr.mxu0 0.0
      %1155 = vmatpush1.msra.mxu0 0.0
      %1156 = vmatprep.subr.mxu0 0.0
      %1157 = vmatpush1.msra.mxu0 0.0
      %1158 = vmatprep.subr.mxu0 0.0
      %1159 = vmatpush1.msra.mxu0 0.0
      %1160 = vmatprep.subr.mxu0 0.0
      %1161 = vmatpush1.msra.mxu0 0.0
      %1162 = vmatprep.subr.mxu0 0.0
      %1163 = vmatpush1.msra.mxu0 0.0
      %1164 = vmatprep.subr.mxu0 0.0
      %1165 = vmatpush1.msra.mxu0 0.0
      %1166 = vmatprep.subr.mxu0 0.0
      %1167 = vmatpush1.msra.mxu0 0.0
      %1168 = vmatprep.subr.mxu0 0.0
      %1169 = vmatpush1.msra.mxu0 0.0
      %1170 = vmatprep.subr.mxu0 0.0
      %1171 = vmatpush1.msra.mxu0 0.0
      %1172 = vmatprep.subr.mxu0 0.0
      %1173 = vmatpush1.msra.mxu0 0.0
      %1174 = vmatprep.subr.mxu0 0.0
      %1175 = vmatpush1.msra.mxu0 0.0
      %1176 = vmatprep.subr.mxu0 0.0
      %1177 = vmatpush1.msra.mxu0 0.0
      %1178 = vmatprep.subr.mxu0 0.0
      %1179 = vmatpush1.msra.mxu0 0.0
      %1180 = vmatprep.subr.mxu0 0.0
      %1181 = vmatpush1.msra.mxu0 0.0
      %1182 = vmatprep.subr.mxu0 0.0
      %1183 = vmatpush1.msra.mxu0 0.0
      %1184 = vmatprep.subr.mxu0 0.0
      %1185 = vmatpush1.msra.mxu0 0.0
      %1186 = vmatprep.subr.mxu0 0.0
      %1187 = vmatpush1.msra.mxu0 0.0
      %1188 = vmatprep.subr.mxu0 0.0
      %1189 = vmatpush1.msra.mxu0 0.0
      %1190 = vmatprep.subr.mxu0 0.0
      %1191 = vmatpush1.msra.mxu0 0.0
      %1192 = vmatprep.subr.mxu0 0.0
      %1193 = vmatpush1.msra.mxu0 0.0
      %1194 = vmatprep.mubr.f32.mxu0 0.0
      %1195 = vmatmul.mubr.f32.gmra.mrb[0].mxu0 %v1128
      %v1196 = vpop.f32.mrb[0].mxu0
      %v1197 = vadd.f32 0.0, %v1196
      %v1198 = vpop.f32.mrb[0].mxu0
      %1199 = vdwg.mxu0
      %v1200 = vmax.f32 %v1197, 0.0
      %vm1201 = vcmask 64512
      %v1203 = vsel %vm1201, %v320, 0
      %v1206 = vsel %vm1201, %v321, 0
      %v1209 = vsel %vm1201, %v322, 0
      %v1212 = vsel %vm1201, %v323, 0
      %1214 = vmatprep.subr.mxu0 0.0
      %1215 = vmatpush1.msra.mxu0 %v1200
      %1216 = vmatprep.subr.mxu0 0.0
      %1217 = vmatpush1.msra.mxu0 0.0
      %1218 = vmatprep.subr.mxu0 0.0
      %1219 = vmatpush1.msra.mxu0 0.0
      %1220 = vmatprep.subr.mxu0 0.0
      %1221 = vmatpush1.msra.mxu0 0.0
      %1222 = vmatprep.subr.mxu0 0.0
      %1223 = vmatpush1.msra.mxu0 0.0
      %1224 = vmatprep.subr.mxu0 0.0
      %1225 = vmatpush1.msra.mxu0 0.0
      %1226 = vmatprep.subr.mxu0 0.0
      %1227 = vmatpush1.msra.mxu0 0.0
      %1228 = vmatprep.subr.mxu0 0.0
      %1229 = vmatpush1.msra.mxu0 0.0
      %1230 = vmatprep.subr.mxu0 0.0
      %1231 = vmatpush1.msra.mxu0 0.0
      %1232 = vmatprep.subr.mxu0 0.0
      %1233 = vmatpush1.msra.mxu0 0.0
      %1234 = vmatprep.subr.mxu0 0.0
      %1235 = vmatpush1.msra.mxu0 0.0
      %1236 = vmatprep.subr.mxu0 0.0
      %1237 = vmatpush1.msra.mxu0 0.0
      %1238 = vmatprep.subr.mxu0 0.0
      %1239 = vmatpush1.msra.mxu0 0.0
      %1240 = vmatprep.subr.mxu0 0.0
      %1241 = vmatpush1.msra.mxu0 0.0
      %1242 = vmatprep.subr.mxu0 0.0
      %1243 = vmatpush1.msra.mxu0 0.0
      %1244 = vmatprep.subr.mxu0 0.0
      %1245 = vmatpush1.msra.mxu0 0.0
      %1246 = vmatprep.subr.mxu0 0.0
      %1247 = vmatpush1.msra.mxu0 0.0
      %1248 = vmatprep.subr.mxu0 0.0
      %1249 = vmatpush1.msra.mxu0 0.0
      %1250 = vmatprep.subr.mxu0 0.0
      %1251 = vmatpush1.msra.mxu0 0.0
      %1252 = vmatprep.subr.mxu0 0.0
      %1253 = vmatpush1.msra.mxu0 0.0
      %1254 = vmatprep.subr.mxu0 0.0
      %1255 = vmatpush1.msra.mxu0 0.0
      %1256 = vmatprep.subr.mxu0 0.0
      %1257 = vmatpush1.msra.mxu0 0.0
      %1258 = vmatprep.subr.mxu0 0.0
      %1259 = vmatpush1.msra.mxu0 0.0
      %1260 = vmatprep.subr.mxu0 0.0
      %1261 = vmatpush1.msra.mxu0 0.0
      %1262 = vmatprep.subr.mxu0 0.0
      %1263 = vmatpush1.msra.mxu0 0.0
      %1264 = vmatprep.subr.mxu0 0.0
      %1265 = vmatpush1.msra.mxu0 0.0
      %1266 = vmatprep.subr.mxu0 0.0
      %1267 = vmatpush1.msra.mxu0 0.0
      %1268 = vmatprep.subr.mxu0 0.0
      %1269 = vmatpush1.msra.mxu0 0.0
      %1270 = vmatprep.subr.mxu0 0.0
      %1271 = vmatpush1.msra.mxu0 0.0
      %1272 = vmatprep.subr.mxu0 0.0
      %1273 = vmatpush1.msra.mxu0 0.0
      %1274 = vmatprep.subr.mxu0 0.0
      %1275 = vmatpush1.msra.mxu0 0.0
      %1276 = vmatprep.subr.mxu0 0.0
      %1277 = vmatpush1.msra.mxu0 0.0
      %1278 = vmatprep.mubr.f32.mxu0 0.0
      %1279 = vmatmul.mubr.f32.gmra.mrb[0].mxu0 %v1203
      %v1280 = vpop.f32.mrb[0].mxu0
      %v1281 = vadd.f32 0.0, %v1280
      %v1282 = vpop.f32.mrb[0].mxu0
      %1283 = vmatprep.mubr.f32.mxu0 0.0
      %1284 = vmatmul.mubr.f32.gmra.mrb[0].mxu0 %v1206
      %v1285 = vpop.f32.mrb[0].mxu0
      %v1286 = vadd.f32 0.0, %v1285
      %v1287 = vpop.f32.mrb[0].mxu0
      %1288 = vmatprep.mubr.f32.mxu0 0.0
      %1289 = vmatmul.mubr.f32.gmra.mrb[0].mxu0 %v1209
      %v1290 = vpop.f32.mrb[0].mxu0
      %v1291 = vadd.f32 0.0, %v1290
      %v1292 = vpop.f32.mrb[0].mxu0
      %1293 = vmatprep.mubr.f32.mxu0 0.0
      %1294 = vmatmul.mubr.f32.gmra.mrb[0].mxu0 %v1212
      %v1295 = vpop.f32.mrb[0].mxu0
      %v1296 = vadd.f32 0.0, %v1295
      %v1297 = vpop.f32.mrb[0].mxu0
      %1298 = vdwg.mxu0
      %v1299 = vxor.u32 %v1281, 2147483648
      %v1300 = vxor.u32 %v1286, 2147483648
      %v1301 = vxor.u32 %v1291, 2147483648
      %v1302 = vxor.u32 %v1296, 2147483648
      %v1303 = vmul.f32 %v1299, 1.442695
      %v1304 = vpow.pop %v1303
      %v1305 = vmul.f32 %v1300, 1.442695
      %v1306 = vpow.pop %v1305
      %v1307 = vmul.f32 %v1301, 1.442695
      %v1308 = vpow.pop %v1307
      %v1309 = vmul.f32 %v1302, 1.442695
      %v1310 = vpow.pop %v1309
      %v1311 = vadd.f32 %v1304, 1.0
      %v1312 = vadd.f32 %v1306, 1.0
      %v1313 = vadd.f32 %v1308, 1.0
      %v1314 = vadd.f32 %v1310, 1.0
      %v1315 = vrcp.pop %v1311
      %v1316 = vmul.f32 1.0, %v1315
      %v1317 = vrcp.pop %v1312
      %v1318 = vmul.f32 1.0, %v1317
      %v1319 = vrcp.pop %v1313
      %v1320 = vmul.f32 1.0, %v1319
      %v1321 = vrcp.pop %v1314
      %v1322 = vmul.f32 1.0, %v1321
      %1324 = vset.pattern.permute.xlu0 0
      %1325 = vperm.xlu0 %1324, %v1316
      %v1326 = vpop.permute.xlu0 %1325
      %1329 = vset.pattern.permute.xlu0 0
      %1330 = vperm.xlu0 %1329, %v1318
      %v1331 = vpop.permute.xlu0 %1330
      %1334 = vset.pattern.permute.xlu0 0
      %1335 = vperm.xlu0 %1334, %v1320
      %v1336 = vpop.permute.xlu0 %1335
      %1339 = vset.pattern.permute.xlu0 0
      %1340 = vperm.xlu0 %1339, %v1322
      %v1341 = vpop.permute.xlu0 %1340
      %v1343 = vmul.f32 %v1105, %v1326
      %v1344 = vmul.f32 %v1106, %v1331
      %v1345 = vmul.f32 %v1107, %v1336
      %v1346 = vmul.f32 %v1108, %v1341
      %v1347 = vadd.f32 %v1343, %v324
      %v1348 = vadd.f32 %v1344, %v325
      %v1349 = vadd.f32 %v1345, %v326
      %v1350 = vadd.f32 %v1346, %v327
      %v1351 = vmax.f32 %v1347, 0.0
      %v1352 = vmax.f32 %v1348, 0.0
      %v1353 = vmax.f32 %v1349, 0.0
      %v1354 = vmax.f32 %v1350, 0.0
      %1355 = vst.msk [vmem:[%s278] sm:$0xff] %vm1109, %v1351
      %1356 = vst.msk [vmem:[%s278 + $0x8] sm:$0xff] %vm1109, %v1352
      %1357 = vst.msk [vmem:[%s278 + $0x10] sm:$0xff] %vm1109, %v1353
      %1358 = vst.msk [vmem:[%s278 + $0x18] sm:$0xff] %vm1109, %v1354
      %p1359 = scmp.lt.s32.totalorder %s18, 1
      %s1360 = scalar_select %p1359, %s18, 1
      %s1361 = smul.addr %s1360, 4
      %s1362 = smul.addr %s1361, 8
      %s1363 = scalar_lea.vmem %s7, %s1362
      // Predicated region
      $region49: #{tpu_custom_call.1} parent=47 // pred_check
        %p1364 = pneg %p188
      $region50: #{tpu_custom_call.1} parent=47 // pred_check_branch
        %1366 = sbr.rel (%p1364) target = $region52
      $region51: #{tpu_custom_call.1} parent=47 // pred_region
        _
      $region52: #{tpu_custom_call.1} parent=47 // pred_fallthru
        _
    $region48: #{tpu_custom_call.1} parent=5 // pred_fallthru
      _
    %p1367 = scmp.le.s32.totalorder 2, %s13
    // Predicated region
    $region53: #{tpu_custom_call.1} parent=5 // pred_check
      %p1368 = pneg %p1367
    $region54: #{tpu_custom_call.1} parent=5 // pred_check_branch
      %1370 = sbr.rel (%p1368) target = $region56
    $region55: #{tpu_custom_call.1} parent=5 // pred_region
      %s1371 = ssub.s32 %s13, 2
      // Predicated region
      $region57: #{tpu_custom_call.1} parent=55 // pred_check
        %p1372 = pneg %p194
      $region58: #{tpu_custom_call.1} parent=55 // pred_check_branch
        %1374 = sbr.rel (%p1372) target = $region60
      $region59: #{tpu_custom_call.1} parent=55 // pred_region
        %p1375 = scmp.lt.s32.totalorder %s19, 1
        %s1376 = scalar_select %p1375, %s19, 1
        %s1377 = smul.addr %s1376, 4
        %s1378 = smul.addr %s1377, 8
        %s1379 = scalar_lea.vmem %s7, %s1378
      $region60: #{tpu_custom_call.1} parent=55 // pred_fallthru
        _
    $region56: #{tpu_custom_call.1} parent=5 // pred_fallthru
      _
  $region6: #{tpu_custom_call.1} parent=0 // loop_footer
    %s17 = sadd.s32 1, %s13
  $region7: #{tpu_custom_call.1} parent=0 // loop_footer_branch
    %12 = sbr.rel target = $region3
  $region8: #{tpu_custom_call.1} parent=0 // loop_exit
    _

</llo_original>
